<compile_context>
chip_gen: v7x
topology: tpu7x:2x2x1
jax: 0.10.0
libtpu: 0.0.40
codegen_flags: <defaults>
</compile_context>

<pallas_src>
import jax
import jax.numpy as jnp
from jax import lax
from jax.experimental import pallas as pl
from jax.experimental.pallas import tpu as pltpu


def _down_kernel(x_ref, w1_ref, sb1_ref, w2_ref, sb2_ref, out_ref,
                 xp_ref, yp_ref, ostage_ref):
    # x_ref   : (bt, H2, 2, W2, 2*Cin)  NHWC input with 2x2 pool pairs exposed (resident per batch tile)
    # w1_ref  : (3, 3*Cin, Cout)        conv1 weights, per-dy im2col slabs (dx-major, ci-minor)
    # sb1_ref : (2, Cout)               row0 = folded BN scale, row1 = folded bias
    # w2_ref  : (3, 3*Cout, Cout)
    # sb2_ref : (2, Cout)
    # out_ref : (bt, Cout, H2*W2)       NCHW with flattened spatial (batch-resident block)
    # xp_ref  : (bt, sh+4, W2+2, Cin)   zero-bordered pooled strip (+2 halo rows each side)
    # yp_ref  : (bt, sh+2, W2+2, Cout)  zero-bordered conv1 output strip (+1 halo row each side)
    # ostage  : (bt, H2*W2, Cout)       NHWC-flat staging of the batch tile's output
    bt = x_ref.shape[0]
    wo = x_ref.shape[3]                 # W2
    cin = x_ref.shape[4] // 2
    sh = xp_ref.shape[1] - 4            # pooled rows per strip
    cout = out_ref.shape[1]
    f32 = jnp.float32

    r = pl.program_id(1)
    last = pl.num_programs(1) - 1
    row0 = pl.multiple_of(r * sh, sh)   # first pooled/output row of this strip

    # ---------------- MaxPool2d(2): only the rows this strip needs ----------------
    def pool_rows(start, k):
        xs = x_ref[:, pl.ds(start, k), :, :, :]                # (bt, k, 2, W2, 2*Cin)
        vmax = jnp.maximum(xs[:, :, 0, :, :], xs[:, :, 1, :, :])
        return jnp.maximum(vmax[..., :cin], vmax[..., cin:])   # (bt, k, W2, Cin)

    # Border-only zeroing (halo row slots + 2 border columns); interior is overwritten below.
    xp_ref[:, 0:2, :, :] = jnp.zeros((bt, 2, wo + 2, cin), f32)
    xp_ref[:, sh + 2:sh + 4, :, :] = jnp.zeros((bt, 2, wo + 2, cin), f32)
    xp_ref[:, :, 0:1, :] = jnp.zeros((bt, sh + 4, 1, cin), f32)
    xp_ref[:, :, wo + 1:wo + 2, :] = jnp.zeros((bt, sh + 4, 1, cin), f32)

    xp_ref[:, 2:sh + 2, 1:wo + 1, :] = pool_rows(row0, sh)

    @pl.when(r > 0)
    def _():                            # 2-row top halo (recomputed from the resident block)
        xp_ref[:, 0:2, 1:wo + 1, :] = pool_rows(row0 - 2, 2)

    @pl.when(r < last)
    def _():                            # 2-row bottom halo
        xp_ref[:, sh + 2:sh + 4, 1:wo + 1, :] = pool_rows(row0 + sh, 2)

    # -------- conv3x3 + folded BN + ReLU as 3 accumulating im2col matmuls (per dy) --------
    def conv_bn_relu(xpad, w_ref, sb_ref, n_rows):
        ci = xpad.shape[-1]
        # single W-direction shift/concat; every H shift below is a free major-dim slice
        rows = jnp.concatenate(
            [xpad[:, :, dx:dx + wo, :] for dx in range(3)], axis=-1)   # (bt, n_rows+2, W2, 3*ci)
        m = bt * n_rows * wo
        acc = jnp.zeros((m, cout), f32)
        for dy in range(3):
            lhs = rows[:, dy:dy + n_rows, :, :].reshape(m, 3 * ci)
            acc = acc + jnp.dot(lhs.astype(w_ref.dtype), w_ref[dy, :, :],
                                preferred_element_type=f32)
        # folded BatchNorm (eval) + ReLU, kept in f32 (v5e VPU has no bf16)
        return jnp.maximum(acc * sb_ref[0:1, :] + sb_ref[1:2, :], 0.0)

    # conv1 over the strip plus one halo row on each side
    y1 = conv_bn_relu(xp_ref[...], w1_ref, sb1_ref, sh + 2)            # (bt*(sh+2)*W2, Cout)

    yp_ref[:, :, 0:1, :] = jnp.zeros((bt, sh + 2, 1, cout), f32)
    yp_ref[:, :, wo + 1:wo + 2, :] = jnp.zeros((bt, sh + 2, 1, cout), f32)
    yp_ref[:, :, 1:wo + 1, :] = y1.reshape(bt, sh + 2, wo, cout)

    @pl.when(r == 0)                    # halo row above the image is conv2 zero padding
    def _():
        yp_ref[:, 0:1, :, :] = jnp.zeros((bt, 1, wo + 2, cout), f32)

    @pl.when(r == last)                 # halo row below the image is conv2 zero padding
    def _():
        yp_ref[:, sh + 1:sh + 2, :, :] = jnp.zeros((bt, 1, wo + 2, cout), f32)

    # conv2 over exactly this strip's sh output rows
    y2 = conv_bn_relu(yp_ref[...], w2_ref, sb2_ref, sh)                # (bt*sh*W2, Cout)

    # Stage NHWC-flat (8-aligned dynamic sublane store); transpose once per batch tile.
    start = pl.multiple_of(row0 * wo, sh * wo)
    ostage_ref[:, pl.ds(start, sh * wo), :] = y2.reshape(bt, sh * wo, cout)

    @pl.when(r == last)
    def _():
        # single lane-dense NCHW-flat write of the whole batch tile's output
        out_ref[...] = jnp.swapaxes(ostage_ref[...], 1, 2)


def down_forward(x_nchw, params, *, batch_tile=1, rows_per_strip=None,
                 matmul_dtype=jnp.float32, vmem_limit_bytes=48 * 1024 * 1024):
    w1, sb1, w2, sb2 = params
    N, Cin, H, W = x_nchw.shape
    assert H % 2 == 0 and W % 2 == 0
    H2, W2 = H // 2, W // 2
    Cout = w1.shape[-1]

    bt = batch_tile
    assert N % bt == 0

    if rows_per_strip is None:
        # Largest row strip that still gives >= 4 grid steps (pipelining + megacore headroom).
        # For large images / v7x (64 MiB VMEM) pass a smaller rows_per_strip explicitly.
        rows_per_strip = H2
        for cand in range(H2, 1, -1):
            if H2 % cand == 0 and (N // bt) * (H2 // cand) >= 4:
                rows_per_strip = cand
                break
    sh = rows_per_strip
    assert H2 % sh == 0 and sh >= 2
    n_strips = H2 // sh

    # NCHW -> NHWC (one HBM pass; channels must be minor for the im2col K ordering),
    # then a FREE reshape exposing the 2x2 pool pairs. Pooling itself happens in-kernel,
    # so there is no separate pool-window packing pass over HBM.
    x = jnp.transpose(x_nchw, (0, 2, 3, 1)).reshape(N, H2, 2, W2, 2 * Cin)

    # (ky, kx, ci, co) -> per-dy im2col slabs (3, 3*ci, co).  bf16 on v6e/v7x, f32 for validation.
    w1r = w1.reshape(3, 3 * Cin, Cout).astype(matmul_dtype)
    w2r = w2.reshape(3, 3 * Cout, Cout).astype(matmul_dtype)

    out_flat = pl.pallas_call(
        _down_kernel,
        out_shape=jax.ShapeDtypeStruct((N, Cout, H2 * W2), jnp.float32),
        grid_spec=pltpu.PrefetchScalarGridSpec(
            num_scalar_prefetch=0,
            grid=(N // bt, n_strips),
            in_specs=[
                # Full-height input block, resident across the strip axis (DMA'd once per
                # batch tile).  On v5e, pipeline_mode=pl.Buffered(3) is a knob if this DMA
                # is ever exposed.
                pl.BlockSpec((bt, H2, 2, W2, 2 * Cin), lambda n, r: (n, 0, 0, 0, 0)),
                pl.BlockSpec((3, 3 * Cin, Cout), lambda n, r: (0, 0, 0)),
                pl.BlockSpec((2, Cout), lambda n, r: (0, 0)),
                pl.BlockSpec((3, 3 * Cout, Cout), lambda n, r: (0, 0, 0)),
                pl.BlockSpec((2, Cout), lambda n, r: (0, 0)),
            ],
            # Output block is batch-resident and written once (at the last strip) -> the
            # HBM flush is a dense (Cout, H2*W2) slab per image (lane width H2*W2).
            out_specs=pl.BlockSpec((bt, Cout, H2 * W2), lambda n, r: (n, 0, 0)),
            scratch_shapes=[
                pltpu.VMEM((bt, sh + 4, W2 + 2, Cin), jnp.float32),   # padded pooled strip
                pltpu.VMEM((bt, sh + 2, W2 + 2, Cout), jnp.float32),  # padded conv1 strip
                pltpu.VMEM((bt, H2 * W2, Cout), jnp.float32),         # NHWC-flat output stage
            ],
        ),
        compiler_params=pltpu.CompilerParams(
            # Batch axis sharded across v7x's 2 TensorCores; strip axis must stay
            # "arbitrary" because the output/staging buffers are batch-resident.
            dimension_semantics=("parallel", "arbitrary"),
            vmem_limit_bytes=vmem_limit_bytes,
        ),
    )(x, w1r, sb1, w2r, sb2)

    # Free reshape (no transpose pass): (N, Cout, H2*W2) -> NCHW
    return out_flat.reshape(N, Cout, H2, W2)


def init_params(key, in_ch, out_ch):
    """Deterministic synthetic parameters; BN (eval) + conv bias folded to scale/bias."""
    ks = jax.random.split(key, 12)
    eps = 1e-5

    def bn_fold(kg, kb, km, kv, conv_b, ch):
        gamma = 1.0 + 0.1 * jax.random.normal(kg, (ch,), jnp.float32)
        beta = 0.1 * jax.random.normal(kb, (ch,), jnp.float32)
        mean = 0.1 * jax.random.normal(km, (ch,), jnp.float32)
        var = 0.5 + jnp.abs(jax.random.normal(kv, (ch,), jnp.float32))
        s = gamma / jnp.sqrt(var + eps)
        t = beta - mean * s
        return jnp.stack([s, conv_b * s + t], axis=0)               # (2, ch)

    w1 = 0.1 * jax.random.normal(ks[0], (3, 3, in_ch, out_ch), jnp.float32)
    b1 = 0.1 * jax.random.normal(ks[1], (out_ch,), jnp.float32)
    sb1 = bn_fold(ks[2], ks[3], ks[4], ks[5], b1, out_ch)

    w2 = 0.1 * jax.random.normal(ks[6], (3, 3, out_ch, out_ch), jnp.float32)
    b2 = 0.1 * jax.random.normal(ks[7], (out_ch,), jnp.float32)
    sb2 = bn_fold(ks[8], ks[9], ks[10], ks[11], b2, out_ch)
    return w1, sb1, w2, sb2


def reference(x_nchw, params):
    """Plain-JAX reference mirroring the PyTorch forward (eval-mode BN)."""
    w1, sb1, w2, sb2 = params
    N, C, H, W = x_nchw.shape
    p = x_nchw.reshape(N, C, H // 2, 2, W // 2, 2).max(axis=(3, 5))

    def conv_bn_relu(x, w, sb):
        w_oihw = jnp.transpose(w, (3, 2, 0, 1))
        y = lax.conv_general_dilated(
            x, w_oihw, (1, 1), ((1, 1), (1, 1)),
            dimension_numbers=("NCHW", "OIHW", "NCHW"))
        y = y * sb[0][None, :, None, None] + sb[1][None, :, None, None]
        return jnp.maximum(y, 0.0)

    return conv_bn_relu(conv_bn_relu(p, w1, sb1), w2, sb2)


if __name__ == "__main__":
    key = jax.random.PRNGKey(0)
    kx, kp = jax.random.split(key)

    N, Cin, H, W = 2, 4, 16, 16
    Cout = 8

    x = jax.random.normal(kx, (N, Cin, H, W), jnp.float32)
    params = init_params(kp, Cin, Cout)
    ref = reference(x, params)

    # f32 MXU path (tight validation)
    out = jax.block_until_ready(down_forward(x, params, matmul_dtype=jnp.float32))
    assert out.shape == (N, Cout, H // 2, W // 2), out.shape
    assert jnp.allclose(out, ref, atol=1e-4, rtol=1e-4), \
        float(jnp.max(jnp.abs(out - ref)))

    # bf16 MXU path (v6e/v7x-friendly); looser tolerance, accumulation stays f32
    out_bf16 = jax.block_until_ready(down_forward(x, params, matmul_dtype=jnp.bfloat16))
    assert jnp.allclose(out_bf16, ref, atol=5e-2, rtol=5e-2), \
        float(jnp.max(jnp.abs(out_bf16 - ref)))

    print("KERNEL_OK")
</pallas_src>

<mosaic_0001>
module attributes {stable_mosaic.version = 11 : i64} {
  func.func @_down_kernel(%arg0: i32, %arg1: i32, %arg2: memref<1x8x2x8x8xf32, #tpu.memory_space<vmem>>, %arg3: memref<3x12x8xf32, #tpu.memory_space<vmem>>, %arg4: memref<2x8xf32, #tpu.memory_space<vmem>>, %arg5: memref<3x24x8xf32, #tpu.memory_space<vmem>>, %arg6: memref<2x8xf32, #tpu.memory_space<vmem>>, %arg7: memref<1x8x64xf32, #tpu.memory_space<vmem>>, %arg8: memref<1x8x10x4xf32, #tpu.memory_space<vmem>>, %arg9: memref<1x6x10x8xf32, #tpu.memory_space<vmem>>, %arg10: memref<1x64x8xf32, #tpu.memory_space<vmem>>) attributes {dimension_semantics = [#tpu.dimension_semantics<parallel>, #tpu.dimension_semantics<arbitrary>], iteration_bounds = array<i64: 2, 2>, scalar_prefetch = 0 : i64, scratch_operands = 3 : i64, tpu.core_type = #tpu.core_type<tc>, window_params = [{transform_indices = @transform_0, window_bounds = array<i64: 1, 8, 2, 8, 8>}, {pipeline_mode = #tpu.pipeline_mode<synchronous>, transform_indices = @transform_1, window_bounds = array<i64: 3, 12, 8>}, {pipeline_mode = #tpu.pipeline_mode<synchronous>, transform_indices = @transform_2, window_bounds = array<i64: 2, 8>}, {pipeline_mode = #tpu.pipeline_mode<synchronous>, transform_indices = @transform_3, window_bounds = array<i64: 3, 24, 8>}, {pipeline_mode = #tpu.pipeline_mode<synchronous>, transform_indices = @transform_4, window_bounds = array<i64: 2, 8>}, {transform_indices = @transform_5, window_bounds = array<i64: 1, 8, 64>}]} {
    %c4_i32 = arith.constant 4 : i32
    %0 = arith.muli %arg1, %c4_i32 : i32
    %1 = tpu.assume_multiple %0, 4 : i32
    %cst = arith.constant 0.000000e+00 : f32
    %2 = vector.broadcast %cst : f32 to vector<1x2x10x4xf32>
    %c0 = arith.constant 0 : index
    %c0_0 = arith.constant 0 : index
    %c0_1 = arith.constant 0 : index
    %c0_2 = arith.constant 0 : index
    %3 = vector.load %arg8[%c0, %c0_0, %c0_1, %c0_2] : memref<1x8x10x4xf32, #tpu.memory_space<vmem>>, vector<1x2x10x4xf32>
    tpu.vector_store %arg8[%c0, %c0_0, %c0_1, %c0_2], %2 {strides = array<i32>} : memref<1x8x10x4xf32, #tpu.memory_space<vmem>>, vector<1x2x10x4xf32>,
    %cst_3 = arith.constant 0.000000e+00 : f32
    %4 = vector.broadcast %cst_3 : f32 to vector<1x2x10x4xf32>
    %c0_4 = arith.constant 0 : index
    %c6 = arith.constant 6 : index
    %c0_5 = arith.constant 0 : index
    %c0_6 = arith.constant 0 : index
    %5 = vector.load %arg8[%c0_4, %c6, %c0_5, %c0_6] : memref<1x8x10x4xf32, #tpu.memory_space<vmem>>, vector<1x2x10x4xf32>
    tpu.vector_store %arg8[%c0_4, %c6, %c0_5, %c0_6], %4 {strides = array<i32>} : memref<1x8x10x4xf32, #tpu.memory_space<vmem>>, vector<1x2x10x4xf32>,
    %cst_7 = arith.constant 0.000000e+00 : f32
    %6 = vector.broadcast %cst_7 : f32 to vector<1x8x1x4xf32>
    %c0_8 = arith.constant 0 : index
    %c0_9 = arith.constant 0 : index
    %c0_10 = arith.constant 0 : index
    %c0_11 = arith.constant 0 : index
    %7 = vector.load %arg8[%c0_8, %c0_9, %c0_10, %c0_11] : memref<1x8x10x4xf32, #tpu.memory_space<vmem>>, vector<1x8x1x4xf32>
    tpu.vector_store %arg8[%c0_8, %c0_9, %c0_10, %c0_11], %6 {strides = array<i32>} : memref<1x8x10x4xf32, #tpu.memory_space<vmem>>, vector<1x8x1x4xf32>,
    %cst_12 = arith.constant 0.000000e+00 : f32
    %8 = vector.broadcast %cst_12 : f32 to vector<1x8x1x4xf32>
    %c0_13 = arith.constant 0 : index
    %c0_14 = arith.constant 0 : index
    %c9 = arith.constant 9 : index
    %c0_15 = arith.constant 0 : index
    %9 = vector.load %arg8[%c0_13, %c0_14, %c9, %c0_15] : memref<1x8x10x4xf32, #tpu.memory_space<vmem>>, vector<1x8x1x4xf32>
    tpu.vector_store %arg8[%c0_13, %c0_14, %c9, %c0_15], %8 {strides = array<i32>} : memref<1x8x10x4xf32, #tpu.memory_space<vmem>>, vector<1x8x1x4xf32>,
    %c0_16 = arith.constant 0 : index
    %10 = arith.index_cast %1 : i32 to index
    %c0_17 = arith.constant 0 : index
    %c0_18 = arith.constant 0 : index
    %c0_19 = arith.constant 0 : index
    %11 = vector.load %arg2[%c0_16, %10, %c0_17, %c0_18, %c0_19] : memref<1x8x2x8x8xf32, #tpu.memory_space<vmem>>, vector<1x4x2x8x8xf32>
    %12 = vector.extract_strided_slice %11 {offsets = [0, 0, 0, 0, 0], sizes = [1, 4, 1, 8, 8], strides = [1, 1, 1, 1, 1]} : vector<1x4x2x8x8xf32> to vector<1x4x1x8x8xf32>
    %13 = vector.shape_cast %12 : vector<1x4x1x8x8xf32> to vector<1x4x8x8xf32>
    %14 = vector.extract_strided_slice %11 {offsets = [0, 0, 1, 0, 0], sizes = [1, 4, 1, 8, 8], strides = [1, 1, 1, 1, 1]} : vector<1x4x2x8x8xf32> to vector<1x4x1x8x8xf32>
    %15 = vector.shape_cast %14 : vector<1x4x1x8x8xf32> to vector<1x4x8x8xf32>
    %16 = arith.maximumf %13, %15 : vector<1x4x8x8xf32>
    %17 = vector.extract_strided_slice %16 {offsets = [0, 0, 0, 0], sizes = [1, 4, 8, 4], strides = [1, 1, 1, 1]} : vector<1x4x8x8xf32> to vector<1x4x8x4xf32>
    %18 = vector.extract_strided_slice %16 {offsets = [0, 0, 0, 4], sizes = [1, 4, 8, 4], strides = [1, 1, 1, 1]} : vector<1x4x8x8xf32> to vector<1x4x8x4xf32>
    %19 = arith.maximumf %17, %18 : vector<1x4x8x4xf32>
    %c0_20 = arith.constant 0 : index
    %c2 = arith.constant 2 : index
    %c1 = arith.constant 1 : index
    %c0_21 = arith.constant 0 : index
    %20 = vector.load %arg8[%c0_20, %c2, %c1, %c0_21] : memref<1x8x10x4xf32, #tpu.memory_space<vmem>>, vector<1x4x8x4xf32>
    tpu.vector_store %arg8[%c0_20, %c2, %c1, %c0_21], %19 {strides = array<i32>} : memref<1x8x10x4xf32, #tpu.memory_space<vmem>>, vector<1x4x8x4xf32>,
    %c0_i32 = arith.constant 0 : i32
    %21 = arith.cmpi sgt, %arg1, %c0_i32 : i32
    %22 = arith.extui %21 : i1 to i32
    %c0_i32_22 = arith.constant 0 : i32
    %23 = arith.cmpi ne, %22, %c0_i32_22 : i32
    scf.if %23 {
      %c2_i32 = arith.constant 2 : i32
      %111 = arith.subi %1, %c2_i32 : i32
      %c0_90 = arith.constant 0 : index
      %112 = arith.index_cast %111 : i32 to index
      %c0_91 = arith.constant 0 : index
      %c0_92 = arith.constant 0 : index
      %c0_93 = arith.constant 0 : index
      %113 = vector.load %arg2[%c0_90, %112, %c0_91, %c0_92, %c0_93] : memref<1x8x2x8x8xf32, #tpu.memory_space<vmem>>, vector<1x2x2x8x8xf32>
      %114 = vector.extract_strided_slice %113 {offsets = [0, 0, 0, 0, 0], sizes = [1, 2, 1, 8, 8], strides = [1, 1, 1, 1, 1]} : vector<1x2x2x8x8xf32> to vector<1x2x1x8x8xf32>
      %115 = vector.shape_cast %114 : vector<1x2x1x8x8xf32> to vector<1x2x8x8xf32>
      %116 = vector.extract_strided_slice %113 {offsets = [0, 0, 1, 0, 0], sizes = [1, 2, 1, 8, 8], strides = [1, 1, 1, 1, 1]} : vector<1x2x2x8x8xf32> to vector<1x2x1x8x8xf32>
      %117 = vector.shape_cast %116 : vector<1x2x1x8x8xf32> to vector<1x2x8x8xf32>
      %118 = arith.maximumf %115, %117 : vector<1x2x8x8xf32>
      %119 = vector.extract_strided_slice %118 {offsets = [0, 0, 0, 0], sizes = [1, 2, 8, 4], strides = [1, 1, 1, 1]} : vector<1x2x8x8xf32> to vector<1x2x8x4xf32>
      %120 = vector.extract_strided_slice %118 {offsets = [0, 0, 0, 4], sizes = [1, 2, 8, 4], strides = [1, 1, 1, 1]} : vector<1x2x8x8xf32> to vector<1x2x8x4xf32>
      %121 = arith.maximumf %119, %120 : vector<1x2x8x4xf32>
      %c0_94 = arith.constant 0 : index
      %c0_95 = arith.constant 0 : index
      %c1_96 = arith.constant 1 : index
      %c0_97 = arith.constant 0 : index
      %122 = vector.load %arg8[%c0_94, %c0_95, %c1_96, %c0_97] : memref<1x8x10x4xf32, #tpu.memory_space<vmem>>, vector<1x2x8x4xf32>
      tpu.vector_store %arg8[%c0_94, %c0_95, %c1_96, %c0_97], %121 {strides = array<i32>} : memref<1x8x10x4xf32, #tpu.memory_space<vmem>>, vector<1x2x8x4xf32>,
    } else {
    }
    %c1_i32 = arith.constant 1 : i32
    %24 = arith.cmpi slt, %arg1, %c1_i32 : i32
    %25 = arith.extui %24 : i1 to i32
    %c0_i32_23 = arith.constant 0 : i32
    %26 = arith.cmpi ne, %25, %c0_i32_23 : i32
    scf.if %26 {
      %c4_i32_90 = arith.constant 4 : i32
      %111 = arith.addi %1, %c4_i32_90 : i32
      %c0_91 = arith.constant 0 : index
      %112 = arith.index_cast %111 : i32 to index
      %c0_92 = arith.constant 0 : index
      %c0_93 = arith.constant 0 : index
      %c0_94 = arith.constant 0 : index
      %113 = vector.load %arg2[%c0_91, %112, %c0_92, %c0_93, %c0_94] : memref<1x8x2x8x8xf32, #tpu.memory_space<vmem>>, vector<1x2x2x8x8xf32>
      %114 = vector.extract_strided_slice %113 {offsets = [0, 0, 0, 0, 0], sizes = [1, 2, 1, 8, 8], strides = [1, 1, 1, 1, 1]} : vector<1x2x2x8x8xf32> to vector<1x2x1x8x8xf32>
      %115 = vector.shape_cast %114 : vector<1x2x1x8x8xf32> to vector<1x2x8x8xf32>
      %116 = vector.extract_strided_slice %113 {offsets = [0, 0, 1, 0, 0], sizes = [1, 2, 1, 8, 8], strides = [1, 1, 1, 1, 1]} : vector<1x2x2x8x8xf32> to vector<1x2x1x8x8xf32>
      %117 = vector.shape_cast %116 : vector<1x2x1x8x8xf32> to vector<1x2x8x8xf32>
      %118 = arith.maximumf %115, %117 : vector<1x2x8x8xf32>
      %119 = vector.extract_strided_slice %118 {offsets = [0, 0, 0, 0], sizes = [1, 2, 8, 4], strides = [1, 1, 1, 1]} : vector<1x2x8x8xf32> to vector<1x2x8x4xf32>
      %120 = vector.extract_strided_slice %118 {offsets = [0, 0, 0, 4], sizes = [1, 2, 8, 4], strides = [1, 1, 1, 1]} : vector<1x2x8x8xf32> to vector<1x2x8x4xf32>
      %121 = arith.maximumf %119, %120 : vector<1x2x8x4xf32>
      %c0_95 = arith.constant 0 : index
      %c6_96 = arith.constant 6 : index
      %c1_97 = arith.constant 1 : index
      %c0_98 = arith.constant 0 : index
      %122 = vector.load %arg8[%c0_95, %c6_96, %c1_97, %c0_98] : memref<1x8x10x4xf32, #tpu.memory_space<vmem>>, vector<1x2x8x4xf32>
      tpu.vector_store %arg8[%c0_95, %c6_96, %c1_97, %c0_98], %121 {strides = array<i32>} : memref<1x8x10x4xf32, #tpu.memory_space<vmem>>, vector<1x2x8x4xf32>,
    } else {
    }
    %c0_24 = arith.constant 0 : index
    %c0_25 = arith.constant 0 : index
    %c0_26 = arith.constant 0 : index
    %c0_27 = arith.constant 0 : index
    %27 = vector.load %arg8[%c0_24, %c0_25, %c0_26, %c0_27] : memref<1x8x10x4xf32, #tpu.memory_space<vmem>>, vector<1x8x10x4xf32>
    %28 = vector.extract_strided_slice %27 {offsets = [0, 0, 0, 0], sizes = [1, 8, 8, 4], strides = [1, 1, 1, 1]} : vector<1x8x10x4xf32> to vector<1x8x8x4xf32>
    %29 = vector.extract_strided_slice %27 {offsets = [0, 0, 1, 0], sizes = [1, 8, 8, 4], strides = [1, 1, 1, 1]} : vector<1x8x10x4xf32> to vector<1x8x8x4xf32>
    %30 = vector.extract_strided_slice %27 {offsets = [0, 0, 2, 0], sizes = [1, 8, 8, 4], strides = [1, 1, 1, 1]} : vector<1x8x10x4xf32> to vector<1x8x8x4xf32>
    %31 = tpu.concatenate %28, %29, %30 in 3 : vector<1x8x8x4xf32>, vector<1x8x8x4xf32>, vector<1x8x8x4xf32> -> vector<1x8x8x12xf32>
    %cst_28 = arith.constant 0.000000e+00 : f32
    %32 = vector.broadcast %cst_28 : f32 to vector<48x8xf32>
    %33 = vector.extract_strided_slice %31 {offsets = [0, 0, 0, 0], sizes = [1, 6, 8, 12], strides = [1, 1, 1, 1]} : vector<1x8x8x12xf32> to vector<1x6x8x12xf32>
    %34 = vector.shape_cast %33 : vector<1x6x8x12xf32> to vector<48x12xf32>
    %c0_29 = arith.constant 0 : index
    %c0_30 = arith.constant 0 : index
    %c0_31 = arith.constant 0 : index
    %35 = vector.load %arg3[%c0_29, %c0_30, %c0_31] : memref<3x12x8xf32, #tpu.memory_space<vmem>>, vector<1x12x8xf32>
    %36 = vector.shape_cast %35 : vector<1x12x8xf32> to vector<12x8xf32>
    %cst_32 = arith.constant dense<0.000000e+00> : vector<48x8xf32>
    %37 = tpu.matmul %34, %36, %cst_32 {dimension_numbers = #tpu.dot_dimension_numbers<[1], [0], [0], [1], [0, 0, 1, 1], [], []>} : vector<48x12xf32>, vector<12x8xf32>, vector<48x8xf32> -> vector<48x8xf32>
    %38 = arith.addf %32, %37 : vector<48x8xf32>
    %39 = vector.extract_strided_slice %31 {offsets = [0, 1, 0, 0], sizes = [1, 6, 8, 12], strides = [1, 1, 1, 1]} : vector<1x8x8x12xf32> to vector<1x6x8x12xf32>
    %40 = vector.shape_cast %39 : vector<1x6x8x12xf32> to vector<48x12xf32>
    %c1_33 = arith.constant 1 : index
    %c0_34 = arith.constant 0 : index
    %c0_35 = arith.constant 0 : index
    %41 = vector.load %arg3[%c1_33, %c0_34, %c0_35] : memref<3x12x8xf32, #tpu.memory_space<vmem>>, vector<1x12x8xf32>
    %42 = vector.shape_cast %41 : vector<1x12x8xf32> to vector<12x8xf32>
    %cst_36 = arith.constant dense<0.000000e+00> : vector<48x8xf32>
    %43 = tpu.matmul %40, %42, %cst_36 {dimension_numbers = #tpu.dot_dimension_numbers<[1], [0], [0], [1], [0, 0, 1, 1], [], []>} : vector<48x12xf32>, vector<12x8xf32>, vector<48x8xf32> -> vector<48x8xf32>
    %44 = arith.addf %38, %43 : vector<48x8xf32>
    %45 = vector.extract_strided_slice %31 {offsets = [0, 2, 0, 0], sizes = [1, 6, 8, 12], strides = [1, 1, 1, 1]} : vector<1x8x8x12xf32> to vector<1x6x8x12xf32>
    %46 = vector.shape_cast %45 : vector<1x6x8x12xf32> to vector<48x12xf32>
    %c2_37 = arith.constant 2 : index
    %c0_38 = arith.constant 0 : index
    %c0_39 = arith.constant 0 : index
    %47 = vector.load %arg3[%c2_37, %c0_38, %c0_39] : memref<3x12x8xf32, #tpu.memory_space<vmem>>, vector<1x12x8xf32>
    %48 = vector.shape_cast %47 : vector<1x12x8xf32> to vector<12x8xf32>
    %cst_40 = arith.constant dense<0.000000e+00> : vector<48x8xf32>
    %49 = tpu.matmul %46, %48, %cst_40 {dimension_numbers = #tpu.dot_dimension_numbers<[1], [0], [0], [1], [0, 0, 1, 1], [], []>} : vector<48x12xf32>, vector<12x8xf32>, vector<48x8xf32> -> vector<48x8xf32>
    %50 = arith.addf %44, %49 : vector<48x8xf32>
    %c0_41 = arith.constant 0 : index
    %c0_42 = arith.constant 0 : index
    %51 = vector.load %arg4[%c0_41, %c0_42] : memref<2x8xf32, #tpu.memory_space<vmem>>, vector<1x8xf32>
    %52 = vector.broadcast %51 : vector<1x8xf32> to vector<48x8xf32>
    %53 = arith.mulf %50, %52 : vector<48x8xf32>
    %c1_43 = arith.constant 1 : index
    %c0_44 = arith.constant 0 : index
    %54 = vector.load %arg4[%c1_43, %c0_44] : memref<2x8xf32, #tpu.memory_space<vmem>>, vector<1x8xf32>
    %55 = vector.broadcast %54 : vector<1x8xf32> to vector<48x8xf32>
    %56 = arith.addf %53, %55 : vector<48x8xf32>
    %cst_45 = arith.constant 0.000000e+00 : f32
    %57 = vector.broadcast %cst_45 : f32 to vector<48x8xf32>
    %58 = arith.maximumf %56, %57 : vector<48x8xf32>
    %cst_46 = arith.constant 0.000000e+00 : f32
    %59 = vector.broadcast %cst_46 : f32 to vector<1x6x1x8xf32>
    %c0_47 = arith.constant 0 : index
    %c0_48 = arith.constant 0 : index
    %c0_49 = arith.constant 0 : index
    %c0_50 = arith.constant 0 : index
    %60 = vector.load %arg9[%c0_47, %c0_48, %c0_49, %c0_50] : memref<1x6x10x8xf32, #tpu.memory_space<vmem>>, vector<1x6x1x8xf32>
    tpu.vector_store %arg9[%c0_47, %c0_48, %c0_49, %c0_50], %59 {strides = array<i32>} : memref<1x6x10x8xf32, #tpu.memory_space<vmem>>, vector<1x6x1x8xf32>,
    %cst_51 = arith.constant 0.000000e+00 : f32
    %61 = vector.broadcast %cst_51 : f32 to vector<1x6x1x8xf32>
    %c0_52 = arith.constant 0 : index
    %c0_53 = arith.constant 0 : index
    %c9_54 = arith.constant 9 : index
    %c0_55 = arith.constant 0 : index
    %62 = vector.load %arg9[%c0_52, %c0_53, %c9_54, %c0_55] : memref<1x6x10x8xf32, #tpu.memory_space<vmem>>, vector<1x6x1x8xf32>
    tpu.vector_store %arg9[%c0_52, %c0_53, %c9_54, %c0_55], %61 {strides = array<i32>} : memref<1x6x10x8xf32, #tpu.memory_space<vmem>>, vector<1x6x1x8xf32>,
    %63 = vector.shape_cast %58 : vector<48x8xf32> to vector<1x6x8x8xf32>
    %c0_56 = arith.constant 0 : index
    %c0_57 = arith.constant 0 : index
    %c1_58 = arith.constant 1 : index
    %c0_59 = arith.constant 0 : index
    %64 = vector.load %arg9[%c0_56, %c0_57, %c1_58, %c0_59] : memref<1x6x10x8xf32, #tpu.memory_space<vmem>>, vector<1x6x8x8xf32>
    tpu.vector_store %arg9[%c0_56, %c0_57, %c1_58, %c0_59], %63 {strides = array<i32>} : memref<1x6x10x8xf32, #tpu.memory_space<vmem>>, vector<1x6x8x8xf32>,
    %c0_i32_60 = arith.constant 0 : i32
    %65 = arith.cmpi eq, %arg1, %c0_i32_60 : i32
    %66 = arith.extui %65 : i1 to i32
    %c0_i32_61 = arith.constant 0 : i32
    %67 = arith.cmpi ne, %66, %c0_i32_61 : i32
    scf.if %67 {
      %cst_90 = arith.constant 0.000000e+00 : f32
      %111 = vector.broadcast %cst_90 : f32 to vector<1x1x10x8xf32>
      %c0_91 = arith.constant 0 : index
      %c0_92 = arith.constant 0 : index
      %c0_93 = arith.constant 0 : index
      %c0_94 = arith.constant 0 : index
      %112 = vector.load %arg9[%c0_91, %c0_92, %c0_93, %c0_94] : memref<1x6x10x8xf32, #tpu.memory_space<vmem>>, vector<1x1x10x8xf32>
      tpu.vector_store %arg9[%c0_91, %c0_92, %c0_93, %c0_94], %111 {strides = array<i32>} : memref<1x6x10x8xf32, #tpu.memory_space<vmem>>, vector<1x1x10x8xf32>,
    } else {
    }
    %c1_i32_62 = arith.constant 1 : i32
    %68 = arith.cmpi eq, %arg1, %c1_i32_62 : i32
    %69 = arith.extui %68 : i1 to i32
    %c0_i32_63 = arith.constant 0 : i32
    %70 = arith.cmpi ne, %69, %c0_i32_63 : i32
    scf.if %70 {
      %cst_90 = arith.constant 0.000000e+00 : f32
      %111 = vector.broadcast %cst_90 : f32 to vector<1x1x10x8xf32>
      %c0_91 = arith.constant 0 : index
      %c5 = arith.constant 5 : index
      %c0_92 = arith.constant 0 : index
      %c0_93 = arith.constant 0 : index
      %112 = vector.load %arg9[%c0_91, %c5, %c0_92, %c0_93] : memref<1x6x10x8xf32, #tpu.memory_space<vmem>>, vector<1x1x10x8xf32>
      tpu.vector_store %arg9[%c0_91, %c5, %c0_92, %c0_93], %111 {strides = array<i32>} : memref<1x6x10x8xf32, #tpu.memory_space<vmem>>, vector<1x1x10x8xf32>,
    } else {
    }
    %c0_64 = arith.constant 0 : index
    %c0_65 = arith.constant 0 : index
    %c0_66 = arith.constant 0 : index
    %c0_67 = arith.constant 0 : index
    %71 = vector.load %arg9[%c0_64, %c0_65, %c0_66, %c0_67] : memref<1x6x10x8xf32, #tpu.memory_space<vmem>>, vector<1x6x10x8xf32>
    %72 = vector.extract_strided_slice %71 {offsets = [0, 0, 0, 0], sizes = [1, 6, 8, 8], strides = [1, 1, 1, 1]} : vector<1x6x10x8xf32> to vector<1x6x8x8xf32>
    %73 = vector.extract_strided_slice %71 {offsets = [0, 0, 1, 0], sizes = [1, 6, 8, 8], strides = [1, 1, 1, 1]} : vector<1x6x10x8xf32> to vector<1x6x8x8xf32>
    %74 = vector.extract_strided_slice %71 {offsets = [0, 0, 2, 0], sizes = [1, 6, 8, 8], strides = [1, 1, 1, 1]} : vector<1x6x10x8xf32> to vector<1x6x8x8xf32>
    %75 = tpu.concatenate %72, %73, %74 in 3 : vector<1x6x8x8xf32>, vector<1x6x8x8xf32>, vector<1x6x8x8xf32> -> vector<1x6x8x24xf32>
    %cst_68 = arith.constant 0.000000e+00 : f32
    %76 = vector.broadcast %cst_68 : f32 to vector<32x8xf32>
    %77 = vector.extract_strided_slice %75 {offsets = [0, 0, 0, 0], sizes = [1, 4, 8, 24], strides = [1, 1, 1, 1]} : vector<1x6x8x24xf32> to vector<1x4x8x24xf32>
    %78 = vector.shape_cast %77 : vector<1x4x8x24xf32> to vector<32x24xf32>
    %c0_69 = arith.constant 0 : index
    %c0_70 = arith.constant 0 : index
    %c0_71 = arith.constant 0 : index
    %79 = vector.load %arg5[%c0_69, %c0_70, %c0_71] : memref<3x24x8xf32, #tpu.memory_space<vmem>>, vector<1x24x8xf32>
    %80 = vector.shape_cast %79 : vector<1x24x8xf32> to vector<24x8xf32>
    %cst_72 = arith.constant dense<0.000000e+00> : vector<32x8xf32>
    %81 = tpu.matmul %78, %80, %cst_72 {dimension_numbers = #tpu.dot_dimension_numbers<[1], [0], [0], [1], [0, 0, 1, 1], [], []>} : vector<32x24xf32>, vector<24x8xf32>, vector<32x8xf32> -> vector<32x8xf32>
    %82 = arith.addf %76, %81 : vector<32x8xf32>
    %83 = vector.extract_strided_slice %75 {offsets = [0, 1, 0, 0], sizes = [1, 4, 8, 24], strides = [1, 1, 1, 1]} : vector<1x6x8x24xf32> to vector<1x4x8x24xf32>
    %84 = vector.shape_cast %83 : vector<1x4x8x24xf32> to vector<32x24xf32>
    %c1_73 = arith.constant 1 : index
    %c0_74 = arith.constant 0 : index
    %c0_75 = arith.constant 0 : index
    %85 = vector.load %arg5[%c1_73, %c0_74, %c0_75] : memref<3x24x8xf32, #tpu.memory_space<vmem>>, vector<1x24x8xf32>
    %86 = vector.shape_cast %85 : vector<1x24x8xf32> to vector<24x8xf32>
    %cst_76 = arith.constant dense<0.000000e+00> : vector<32x8xf32>
    %87 = tpu.matmul %84, %86, %cst_76 {dimension_numbers = #tpu.dot_dimension_numbers<[1], [0], [0], [1], [0, 0, 1, 1], [], []>} : vector<32x24xf32>, vector<24x8xf32>, vector<32x8xf32> -> vector<32x8xf32>
    %88 = arith.addf %82, %87 : vector<32x8xf32>
    %89 = vector.extract_strided_slice %75 {offsets = [0, 2, 0, 0], sizes = [1, 4, 8, 24], strides = [1, 1, 1, 1]} : vector<1x6x8x24xf32> to vector<1x4x8x24xf32>
    %90 = vector.shape_cast %89 : vector<1x4x8x24xf32> to vector<32x24xf32>
    %c2_77 = arith.constant 2 : index
    %c0_78 = arith.constant 0 : index
    %c0_79 = arith.constant 0 : index
    %91 = vector.load %arg5[%c2_77, %c0_78, %c0_79] : memref<3x24x8xf32, #tpu.memory_space<vmem>>, vector<1x24x8xf32>
    %92 = vector.shape_cast %91 : vector<1x24x8xf32> to vector<24x8xf32>
    %cst_80 = arith.constant dense<0.000000e+00> : vector<32x8xf32>
    %93 = tpu.matmul %90, %92, %cst_80 {dimension_numbers = #tpu.dot_dimension_numbers<[1], [0], [0], [1], [0, 0, 1, 1], [], []>} : vector<32x24xf32>, vector<24x8xf32>, vector<32x8xf32> -> vector<32x8xf32>
    %94 = arith.addf %88, %93 : vector<32x8xf32>
    %c0_81 = arith.constant 0 : index
    %c0_82 = arith.constant 0 : index
    %95 = vector.load %arg6[%c0_81, %c0_82] : memref<2x8xf32, #tpu.memory_space<vmem>>, vector<1x8xf32>
    %96 = vector.broadcast %95 : vector<1x8xf32> to vector<32x8xf32>
    %97 = arith.mulf %94, %96 : vector<32x8xf32>
    %c1_83 = arith.constant 1 : index
    %c0_84 = arith.constant 0 : index
    %98 = vector.load %arg6[%c1_83, %c0_84] : memref<2x8xf32, #tpu.memory_space<vmem>>, vector<1x8xf32>
    %99 = vector.broadcast %98 : vector<1x8xf32> to vector<32x8xf32>
    %100 = arith.addf %97, %99 : vector<32x8xf32>
    %cst_85 = arith.constant 0.000000e+00 : f32
    %101 = vector.broadcast %cst_85 : f32 to vector<32x8xf32>
    %102 = arith.maximumf %100, %101 : vector<32x8xf32>
    %c8_i32 = arith.constant 8 : i32
    %103 = arith.muli %1, %c8_i32 : i32
    %104 = tpu.assume_multiple %103, 32 : i32
    %105 = vector.shape_cast %102 : vector<32x8xf32> to vector<1x32x8xf32>
    %c0_86 = arith.constant 0 : index
    %106 = arith.index_cast %104 : i32 to index
    %c0_87 = arith.constant 0 : index
    %107 = vector.load %arg10[%c0_86, %106, %c0_87] : memref<1x64x8xf32, #tpu.memory_space<vmem>>, vector<1x32x8xf32>
    tpu.vector_store %arg10[%c0_86, %106, %c0_87], %105 {strides = array<i32>} : memref<1x64x8xf32, #tpu.memory_space<vmem>>, vector<1x32x8xf32>,
    %c1_i32_88 = arith.constant 1 : i32
    %108 = arith.cmpi eq, %arg1, %c1_i32_88 : i32
    %109 = arith.extui %108 : i1 to i32
    %c0_i32_89 = arith.constant 0 : i32
    %110 = arith.cmpi ne, %109, %c0_i32_89 : i32
    scf.if %110 {
      %c0_90 = arith.constant 0 : index
      %c0_91 = arith.constant 0 : index
      %c0_92 = arith.constant 0 : index
      %111 = vector.load %arg10[%c0_90, %c0_91, %c0_92] : memref<1x64x8xf32, #tpu.memory_space<vmem>>, vector<1x64x8xf32>
      %112 = tpu.transpose %111, [0, 2, 1] : vector<1x64x8xf32> -> vector<1x8x64xf32>
      %c0_93 = arith.constant 0 : index
      %c0_94 = arith.constant 0 : index
      %c0_95 = arith.constant 0 : index
      %113 = vector.load %arg7[%c0_93, %c0_94, %c0_95] : memref<1x8x64xf32, #tpu.memory_space<vmem>>, vector<1x8x64xf32>
      tpu.vector_store %arg7[%c0_93, %c0_94, %c0_95], %112 {strides = array<i32>} : memref<1x8x64xf32, #tpu.memory_space<vmem>>, vector<1x8x64xf32>,
    } else {
    }
    return
  }
  func.func @transform_0(%arg0: i32, %arg1: i32) -> (i32, i32, i32, i32, i32) {
    %c0_i32 = arith.constant 0 : i32
    %c0_i32_0 = arith.constant 0 : i32
    %c0_i32_1 = arith.constant 0 : i32
    %c0_i32_2 = arith.constant 0 : i32
    %c0_i32_3 = arith.constant 0 : i32
    return %arg0, %c0_i32, %c0_i32_0, %c0_i32_1, %c0_i32_2 : i32, i32, i32, i32, i32
  }
  func.func @transform_1(%arg0: i32, %arg1: i32) -> (i32, i32, i32) {
    %c0_i32 = arith.constant 0 : i32
    %c0_i32_0 = arith.constant 0 : i32
    %c0_i32_1 = arith.constant 0 : i32
    %c0_i32_2 = arith.constant 0 : i32
    return %c0_i32, %c0_i32_0, %c0_i32_1 : i32, i32, i32
  }
  func.func @transform_2(%arg0: i32, %arg1: i32) -> (i32, i32) {
    %c0_i32 = arith.constant 0 : i32
    %c0_i32_0 = arith.constant 0 : i32
    %c0_i32_1 = arith.constant 0 : i32
    return %c0_i32, %c0_i32_0 : i32, i32
  }
  func.func @transform_3(%arg0: i32, %arg1: i32) -> (i32, i32, i32) {
    %c0_i32 = arith.constant 0 : i32
    %c0_i32_0 = arith.constant 0 : i32
    %c0_i32_1 = arith.constant 0 : i32
    %c0_i32_2 = arith.constant 0 : i32
    return %c0_i32, %c0_i32_0, %c0_i32_1 : i32, i32, i32
  }
  func.func @transform_4(%arg0: i32, %arg1: i32) -> (i32, i32) {
    %c0_i32 = arith.constant 0 : i32
    %c0_i32_0 = arith.constant 0 : i32
    %c0_i32_1 = arith.constant 0 : i32
    return %c0_i32, %c0_i32_0 : i32, i32
  }
  func.func @transform_5(%arg0: i32, %arg1: i32) -> (i32, i32, i32) {
    %c0_i32 = arith.constant 0 : i32
    %c0_i32_0 = arith.constant 0 : i32
    %c0_i32_1 = arith.constant 0 : i32
    return %arg0, %c0_i32, %c0_i32_0 : i32, i32, i32
  }
}

</mosaic_0001>

<llo_original>
// kernel: tpu_custom_call.1
$region0: #{tpu_custom_call.1}
  #allocation0 [shape = 'u32[]', space=smem, size = 0x4, offset = 0x4, fixed_abs, tag = 'smem constant byte address 0x4 - core index']
  #allocation1 [shape = 'u32[144,128]{1,0:T(1,128)}', space=vmem, size = 0x12000, scoped, tag = 'internal scratch']
  #allocation2 [shape = 'f32[1,8,10,4]{3,2,1,0:T(8,128)}', space=vmem, size = 0x10000, scoped, tag = 'scratch operand']
  #allocation3 [shape = 'f32[1,6,10,8]{3,2,1,0:T(8,128)}', space=vmem, size = 0xc000, scoped, tag = 'scratch operand']
  #allocation4 [shape = 'f32[1,64,8]{2,1,0:T(8,128)}', space=vmem, size = 0x8000, scoped, tag = 'scratch operand']
  %s0 = inlined_call_operand.hbm [shape: f32[2,8,2,8,8], index: 0, kind: input, shape index: {}]
  %s1 = inlined_call_operand.vmem [shape: f32[3,12,8], index: 1, kind: input, shape index: {}]
  %s2 = inlined_call_operand.vmem [shape: f32[2,8], index: 2, kind: input, shape index: {}]
  %s3 = inlined_call_operand.vmem [shape: f32[3,24,8], index: 3, kind: input, shape index: {}]
  %s4 = inlined_call_operand.vmem [shape: f32[2,8], index: 4, kind: input, shape index: {}]
  %s5 = inlined_call_operand.hbm [shape: f32[2,8,64], index: 5, kind: output, shape index: {}]
  %s6 = sld [smem:[#allocation0]]
  $region77: #{tpu_custom_call.1} parent=0
    _
  %s8 = ssub.s32 1, %s6
  %s9 = scalar_select 0, %s8, %s6
  $region1: #{tpu_custom_call.1} parent=0
    #allocation5 [shape = 'u8[131072]{0}', space=vmem, size = 0x20000, scoped, tag = 'input window, operand 0']
    #allocation6 [shape = 's32[2]{0}', space=sflag, size = 0x8, scoped, tag = 'scoped memory for tpu_custom_call.1']
    #allocation7 [shape = 's32[2]{0}', space=sflag, size = 0x8, scoped, tag = 'scoped memory for tpu_custom_call.1']
    #allocation8 [shape = 'u8[8192]{0}', space=vmem, size = 0x2000, scoped, tag = 'output window, operand 0']
    %10 = vsyncpa [#allocation6], 0
    %s11 = scalar_lea.sflag [#allocation6], 1
    %12 = vsyncpa %s11, 0
    %13 = vsyncpa [#allocation7], 0
    %s14 = scalar_lea.sflag [#allocation7], 1
    %15 = vsyncpa %s14, 0
    loop: start=0, step=1, limit=6
    $region2: #{tpu_custom_call.1} parent=1 // loop_pre_header
      _
    $region3: #{tpu_custom_call.1} parent=1 // loop_header
      %s17 = sphi 0, %s21
      %p18 = scmp.ge.s32.totalorder %s17, 6
      %s24 = sphi 0, %s36
      %s25 = sphi 0, %s32
      %s26 = sphi 0, %s24
      %s27 = sphi 0, %s25
      %s28 = sphi 0, %s26
      %s29 = sphi 0, %s27
      %s39 = sphi 0, %s41
      %s42 = sphi 0, %s39
      %s43 = sphi 0, %s42
      %s59 = sphi 0, %s43
      %s63 = sphi 0, %s63
      %s65 = sphi 0, %s63
      %s66 = sphi 0, %s65
      %s80 = sphi 0, %s66
      %s84 = sphi 0, %s84
      %s86 = sphi 0, %s84
      %s87 = sphi 0, %s86
      %s101 = sphi 0, %s87
      %s105 = sphi 0, %s105
      %s107 = sphi 0, %s105
      %s108 = sphi 0, %s107
      %s122 = sphi 0, %s108
      %s126 = sphi 0, %s126
      %s128 = sphi 0, %s126
      %s129 = sphi 0, %s128
      %s143 = sphi 0, %s129
      %s149 = sphi 0, %s151
      %s152 = sphi 0, %s149
      %s153 = sphi 0, %s152
      %s169 = sphi 0, %s153
    $region4: #{tpu_custom_call.1} parent=1 // loop_header_branch
      %20 = sbr.rel (%p18) target = $region8
    $region5: #{tpu_custom_call.1} parent=1 // loop_body
      %s22 = ssub.s32 %s17, 1
      %s23 = ssub.s32 %s17, 2
      %s30 = sadd.s32 1, %s25
      %p31 = scmp.ge.s32.totalorder %s30, 2
      %s32 = scalar_select %p31, 0, %s30
      %s33 = sadd.s32 1, %s24
      %s34 = scalar_select %p31, %s33, %s24
      %p35 = scmp.ge.s32.totalorder %s34, 2
      %s36 = scalar_select %p35, 0, %s34
      %s37 = ssub.s32 %s24, %s36
      %p38 = scmp.eq.s32.totalorder %s37, 0
      %s40 = sadd.s32 %s39, 1
      %s41 = scalar_select %p38, %s39, %s40
      %p44 = pneg %p38
      %p45 = scmp.eq.s32.totalorder %s17, 3
      %p46 = por %p44, %p45
      %p47 = scmp.ne.s32.totalorder %s39, %s42
      %p48 = scmp.eq.s32.totalorder %s17, 0
      %p49 = por %p47, %p48
      %p50 = scmp.ne.s32.totalorder %s39, %s42
      %p51 = scmp.eq.s32.totalorder %s22, 3
      %p52 = por %p50, %p51
      %p53 = scmp.ne.s32.totalorder %s42, %s43
      %p54 = scmp.eq.s32.totalorder %s22, 0
      %p55 = por %p53, %p54
      %p56 = scmp.ne.s32.totalorder %s42, %s43
      %p57 = scmp.eq.s32.totalorder %s23, 3
      %p58 = por %p56, %p57
      %p60 = scmp.ne.s32.totalorder %s43, %s59
      %p61 = scmp.eq.s32.totalorder %s23, 0
      %p62 = por %p60, %p61
      %s64 = sadd.s32 %s63, 1
      %p67 = scmp.eq.s32.totalorder %s17, 3
      %p68 = scmp.ne.s32.totalorder %s63, %s65
      %p69 = scmp.eq.s32.totalorder %s17, 0
      %p70 = por %p68, %p69
      %p71 = scmp.ne.s32.totalorder %s63, %s65
      %p72 = scmp.eq.s32.totalorder %s22, 3
      %p73 = por %p71, %p72
      %p74 = scmp.ne.s32.totalorder %s65, %s66
      %p75 = scmp.eq.s32.totalorder %s22, 0
      %p76 = por %p74, %p75
      %p77 = scmp.ne.s32.totalorder %s65, %s66
      %p78 = scmp.eq.s32.totalorder %s23, 3
      %p79 = por %p77, %p78
      %p81 = scmp.ne.s32.totalorder %s66, %s80
      %p82 = scmp.eq.s32.totalorder %s23, 0
      %p83 = por %p81, %p82
      %s85 = sadd.s32 %s84, 1
      %p88 = scmp.eq.s32.totalorder %s17, 3
      %p89 = scmp.ne.s32.totalorder %s84, %s86
      %p90 = scmp.eq.s32.totalorder %s17, 0
      %p91 = por %p89, %p90
      %p92 = scmp.ne.s32.totalorder %s84, %s86
      %p93 = scmp.eq.s32.totalorder %s22, 3
      %p94 = por %p92, %p93
      %p95 = scmp.ne.s32.totalorder %s86, %s87
      %p96 = scmp.eq.s32.totalorder %s22, 0
      %p97 = por %p95, %p96
      %p98 = scmp.ne.s32.totalorder %s86, %s87
      %p99 = scmp.eq.s32.totalorder %s23, 3
      %p100 = por %p98, %p99
      %p102 = scmp.ne.s32.totalorder %s87, %s101
      %p103 = scmp.eq.s32.totalorder %s23, 0
      %p104 = por %p102, %p103
      %s106 = sadd.s32 %s105, 1
      %p109 = scmp.eq.s32.totalorder %s17, 3
      %p110 = scmp.ne.s32.totalorder %s105, %s107
      %p111 = scmp.eq.s32.totalorder %s17, 0
      %p112 = por %p110, %p111
      %p113 = scmp.ne.s32.totalorder %s105, %s107
      %p114 = scmp.eq.s32.totalorder %s22, 3
      %p115 = por %p113, %p114
      %p116 = scmp.ne.s32.totalorder %s107, %s108
      %p117 = scmp.eq.s32.totalorder %s22, 0
      %p118 = por %p116, %p117
      %p119 = scmp.ne.s32.totalorder %s107, %s108
      %p120 = scmp.eq.s32.totalorder %s23, 3
      %p121 = por %p119, %p120
      %p123 = scmp.ne.s32.totalorder %s108, %s122
      %p124 = scmp.eq.s32.totalorder %s23, 0
      %p125 = por %p123, %p124
      %s127 = sadd.s32 %s126, 1
      %p130 = scmp.eq.s32.totalorder %s17, 3
      %p131 = scmp.ne.s32.totalorder %s126, %s128
      %p132 = scmp.eq.s32.totalorder %s17, 0
      %p133 = por %p131, %p132
      %p134 = scmp.ne.s32.totalorder %s126, %s128
      %p135 = scmp.eq.s32.totalorder %s22, 3
      %p136 = por %p134, %p135
      %p137 = scmp.ne.s32.totalorder %s128, %s129
      %p138 = scmp.eq.s32.totalorder %s22, 0
      %p139 = por %p137, %p138
      %p140 = scmp.ne.s32.totalorder %s128, %s129
      %p141 = scmp.eq.s32.totalorder %s23, 3
      %p142 = por %p140, %p141
      %p144 = scmp.ne.s32.totalorder %s129, %s143
      %p145 = scmp.eq.s32.totalorder %s23, 0
      %p146 = por %p144, %p145
      %s147 = ssub.s32 %s24, %s36
      %p148 = scmp.eq.s32.totalorder %s147, 0
      %s150 = sadd.s32 %s149, 1
      %s151 = scalar_select %p148, %s149, %s150
      %p154 = pneg %p148
      %p155 = scmp.eq.s32.totalorder %s17, 3
      %p156 = por %p154, %p155
      %p157 = scmp.ne.s32.totalorder %s149, %s152
      %p158 = scmp.eq.s32.totalorder %s17, 0
      %p159 = por %p157, %p158
      %p160 = scmp.ne.s32.totalorder %s149, %s152
      %p161 = scmp.eq.s32.totalorder %s22, 3
      %p162 = por %p160, %p161
      %p163 = scmp.ne.s32.totalorder %s152, %s153
      %p164 = scmp.eq.s32.totalorder %s22, 0
      %p165 = por %p163, %p164
      %p166 = scmp.ne.s32.totalorder %s152, %s153
      %p167 = scmp.eq.s32.totalorder %s23, 3
      %p168 = por %p166, %p167
      %p170 = scmp.ne.s32.totalorder %s153, %s169
      %p171 = scmp.eq.s32.totalorder %s23, 0
      %p172 = por %p170, %p171
      %p173 = scmp.le.s32.totalorder 1, %s17
      %p174 = scmp.lt.s32.totalorder %s17, 5
      %p175 = pnand %p173, %p174
      %p176 = pneg %p175
      // Predicated region
      $region9: #{tpu_custom_call.1} parent=5 // pred_check
        _
      $region10: #{tpu_custom_call.1} parent=5 // pred_check_branch
        %178 = sbr.rel (%p175) target = $region12
      $region11: #{tpu_custom_call.1} parent=5 // pred_region
        %s179 = ssub.s32 %s17, 1
        // Predicated region
        $region13: #{tpu_custom_call.1} parent=11 // pred_check
          %p180 = pneg %p76
        $region14: #{tpu_custom_call.1} parent=11 // pred_check_branch
          %182 = sbr.rel (%p180) target = $region16
        $region15: #{tpu_custom_call.1} parent=11 // pred_region
          _
        $region16: #{tpu_custom_call.1} parent=11 // pred_fallthru
          _
        // Predicated region
        $region17: #{tpu_custom_call.1} parent=11 // pred_check
          %p183 = pneg %p97
        $region18: #{tpu_custom_call.1} parent=11 // pred_check_branch
          %185 = sbr.rel (%p183) target = $region20
        $region19: #{tpu_custom_call.1} parent=11 // pred_region
          _
        $region20: #{tpu_custom_call.1} parent=11 // pred_fallthru
          _
        // Predicated region
        $region21: #{tpu_custom_call.1} parent=11 // pred_check
          %p186 = pneg %p118
        $region22: #{tpu_custom_call.1} parent=11 // pred_check_branch
          %188 = sbr.rel (%p186) target = $region24
        $region23: #{tpu_custom_call.1} parent=11 // pred_region
          _
        $region24: #{tpu_custom_call.1} parent=11 // pred_fallthru
          _
        // Predicated region
        $region25: #{tpu_custom_call.1} parent=11 // pred_check
          %p189 = pneg %p139
        $region26: #{tpu_custom_call.1} parent=11 // pred_check_branch
          %191 = sbr.rel (%p189) target = $region28
        $region27: #{tpu_custom_call.1} parent=11 // pred_region
          _
        $region28: #{tpu_custom_call.1} parent=11 // pred_fallthru
          _
      $region12: #{tpu_custom_call.1} parent=5 // pred_fallthru
        _
      %p192 = scmp.lt.s32.totalorder %s17, 4
      // Predicated region
      $region29: #{tpu_custom_call.1} parent=5 // pred_check
        %p193 = pneg %p192
      $region30: #{tpu_custom_call.1} parent=5 // pred_check_branch
        %195 = sbr.rel (%p193) target = $region32
      $region31: #{tpu_custom_call.1} parent=5 // pred_region
        // Predicated region
        $region33: #{tpu_custom_call.1} parent=31 // pred_check
          %p196 = pneg %p49
        $region34: #{tpu_custom_call.1} parent=31 // pred_check_branch
          %198 = sbr.rel (%p196) target = $region36
        $region35: #{tpu_custom_call.1} parent=31 // pred_region
          %s199 = sand.u32 %s39, 1
          %s200 = scalar_lea.sflag [#allocation6], %s199
          %s201 = sand.u32 %s39, 1
          %s202 = smul.addr %s201, 128
          %s203 = scalar_lea.vmem [#allocation5], %s202
          %s205 = ssub.s32 2048, 2048
          %206 = vsyncadd %s200, %s205
          %s207 = smul.addr %s24, 16
          %s208 = smul.addr %s207, 128
          %s209 = scalar_lea.hbm %s0, %s208
          %s210 = sshll.u32 %s203, 4
          %s211 = int_to_ptr.vmem [resolvable:$true] %s210
          %216 = dma.hbm_to_vmem [thread:$0]  %s209, 2048, %s211, %s200, 128, 128, 8
        $region36: #{tpu_custom_call.1} parent=31 // pred_fallthru
          _
      $region32: #{tpu_custom_call.1} parent=5 // pred_fallthru
        _
      %p217 = scmp.le.s32.totalorder 1, %s17
      %p218 = scmp.lt.s32.totalorder %s17, 5
      %p219 = pnand %p217, %p218
      %p220 = pneg %p219
      // Predicated region
      $region37: #{tpu_custom_call.1} parent=5 // pred_check
        _
      $region38: #{tpu_custom_call.1} parent=5 // pred_check_branch
        %222 = sbr.rel (%p219) target = $region40
      $region39: #{tpu_custom_call.1} parent=5 // pred_region
        %s223 = ssub.s32 %s17, 1
        %s224 = sand.u32 %s42, 1
        %s225 = scalar_lea.sflag [#allocation6], %s224
        %s226 = sand.u32 %s42, 1
        %s227 = smul.addr %s226, 128
        %s228 = scalar_lea.vmem [#allocation5], %s227
        // Predicated region
        $region41: #{tpu_custom_call.1} parent=39 // pred_check
          %p229 = pneg %p55
        $region42: #{tpu_custom_call.1} parent=39 // pred_check_branch
          %231 = sbr.rel (%p229) target = $region44
        $region43: #{tpu_custom_call.1} parent=39 // pred_region
          %232 = dma.done %s225, 2048
        $region44: #{tpu_custom_call.1} parent=39 // pred_fallthru
          _
        %s233 = sand.u32 %s42, 1
        %s234 = scalar_lea.sflag [#allocation6], %s233
        %s235 = sand.u32 %s42, 1
        %s236 = smul.addr %s235, 128
        %s237 = scalar_lea.vmem [#allocation5], %s236
        %p238 = pneg %p55
        %p239 = pneg %p52
        %p240 = pneg %p76
        %p241 = pneg %p73
        %p242 = pneg %p97
        %p243 = pneg %p94
        %p244 = pneg %p118
        %p245 = pneg %p115
        %p246 = pneg %p139
        %p247 = pneg %p136
        %p248 = pneg %p165
        %p249 = pneg %p162
        %s250 = sand.u32 %s152, 1
        %s251 = scalar_lea.sflag [#allocation7], %s250
        %s252 = sand.u32 %s152, 1
        %s253 = smul.addr %s252, 8
        %s254 = scalar_lea.vmem [#allocation8], %s253
        %s255 = smul.u32 %s27, 4
        %vm256 = vcmask 31744
        %257 = vst.msk [vmem:[#allocation2] sm:$0xff] %vm256, 0.0
        %vm258 = vcmask 25600
        %259 = vst.msk [vmem:[#allocation2 + $0x8] sm:$0x3] %vm258, 0.0
        %260 = vst.msk [vmem:[#allocation2 + $0x10] sm:$0xff] %vm256, 0.0
        %261 = vst.msk [vmem:[#allocation2 + $0x18] sm:$0x3] %vm258, 0.0
        %s262 = scalar_lea.vmem [#allocation2], 96
        %263 = vst.msk [vmem:[%s262] sm:$0xff] %vm256, 0.0
        %264 = vst.msk [vmem:[%s262 + $0x8] sm:$0x3] %vm258, 0.0
        %265 = vst.msk [vmem:[%s262 + $0x10] sm:$0xff] %vm256, 0.0
        %266 = vst.msk [vmem:[%s262 + $0x18] sm:$0x3] %vm258, 0.0
        %vm267 = vcmask 24576
        %268 = vst.msk [vmem:[#allocation2] sm:$0x1] %vm267, 0.0
        %269 = vst.msk [vmem:[#allocation2 + $0x10] sm:$0x1] %vm267, 0.0
        %270 = vst.msk [vmem:[#allocation2 + $0x20] sm:$0x1] %vm267, 0.0
        %271 = vst.msk [vmem:[#allocation2 + $0x30] sm:$0x1] %vm267, 0.0
        %272 = vst.msk [vmem:[#allocation2 + $0x40] sm:$0x1] %vm267, 0.0
        %273 = vst.msk [vmem:[#allocation2 + $0x50] sm:$0x1] %vm267, 0.0
        %274 = vst.msk [vmem:[#allocation2 + $0x60] sm:$0x1] %vm267, 0.0
        %275 = vst.msk [vmem:[#allocation2 + $0x70] sm:$0x1] %vm267, 0.0
        %276 = vst.msk [vmem:[#allocation2 + $0x9] sm:$0x1] %vm267, 0.0
        %277 = vst.msk [vmem:[#allocation2 + $0x19] sm:$0x1] %vm267, 0.0
        %278 = vst.msk [vmem:[#allocation2 + $0x29] sm:$0x1] %vm267, 0.0
        %279 = vst.msk [vmem:[#allocation2 + $0x39] sm:$0x1] %vm267, 0.0
        %280 = vst.msk [vmem:[#allocation2 + $0x49] sm:$0x1] %vm267, 0.0
        %281 = vst.msk [vmem:[#allocation2 + $0x59] sm:$0x1] %vm267, 0.0
        %282 = vst.msk [vmem:[#allocation2 + $0x69] sm:$0x1] %vm267, 0.0
        %283 = vst.msk [vmem:[#allocation2 + $0x79] sm:$0x1] %vm267, 0.0
        %s284 = smul.u32 %s255, 16
        %s285 = scalar_lea.vmem %s228, %s284 [#allocation5]
        %v286 = vld [vmem:[%s285] sm:$0xff]
        %v287 = vld [vmem:[%s285 + $0x8] sm:$0xff]
        %v288 = vld [vmem:[%s285 + $0x10] sm:$0xff]
        %v289 = vld [vmem:[%s285 + $0x18] sm:$0xff]
        %v290 = vld [vmem:[%s285 + $0x20] sm:$0xff]
        %v291 = vld [vmem:[%s285 + $0x28] sm:$0xff]
        %v292 = vld [vmem:[%s285 + $0x30] sm:$0xff]
        %v293 = vld [vmem:[%s285 + $0x38] sm:$0xff]
        %v294 = vmax.f32 %v286, %v287
        %v295 = vmax.f32 %v288, %v289
        %v296 = vmax.f32 %v290, %v291
        %v297 = vmax.f32 %v292, %v293
        %302 = vrot.lane.b32.xlu0 %v294, 124
        %v303 = vpop.permute.xlu0 %302
        %304 = vrot.lane.b32.xlu0 %v295, 124
        %v305 = vpop.permute.xlu0 %304
        %306 = vrot.lane.b32.xlu0 %v296, 124
        %v307 = vpop.permute.xlu0 %306
        %308 = vrot.lane.b32.xlu0 %v297, 124
        %v309 = vpop.permute.xlu0 %308
        %v314 = vmax.f32 %v294, %v303
        %v315 = vmax.f32 %v295, %v305
        %v316 = vmax.f32 %v296, %v307
        %v317 = vmax.f32 %v297, %v309
        %s318 = scalar_lea.vmem [#allocation2], 32
        %319 = vst.msk [vmem:[%s318 + $0x1] sm:$0xff] %vm256, %v314
        %320 = vst.msk [vmem:[%s318 + $0x11] sm:$0xff] %vm256, %v315
        %321 = vst.msk [vmem:[%s318 + $0x21] sm:$0xff] %vm256, %v316
        %322 = vst.msk [vmem:[%s318 + $0x31] sm:$0xff] %vm256, %v317
        %p323 = scmp.gt.s32.totalorder %s27, 0
        // Predicated region
        $region45: #{tpu_custom_call.1} parent=39 // pred_check
          %p324 = pneg %p323
        $region46: #{tpu_custom_call.1} parent=39 // pred_check_branch
          %326 = sbr.rel (%p324) target = $region48
        $region47: #{tpu_custom_call.1} parent=39 // pred_region
          %s327 = ssub.s32 %s255, 2
          %s328 = smul.u32 %s327, 16
          %s329 = scalar_lea.vmem %s228, %s328 [#allocation5]
          %v330 = vld [vmem:[%s329] sm:$0xff]
          %v331 = vld [vmem:[%s329 + $0x8] sm:$0xff]
          %v332 = vld [vmem:[%s329 + $0x10] sm:$0xff]
          %v333 = vld [vmem:[%s329 + $0x18] sm:$0xff]
          %v334 = vmax.f32 %v330, %v331
          %v335 = vmax.f32 %v332, %v333
          %338 = vrot.lane.b32.xlu0 %v334, 124
          %v339 = vpop.permute.xlu0 %338
          %340 = vrot.lane.b32.xlu0 %v335, 124
          %v341 = vpop.permute.xlu0 %340
          %v344 = vmax.f32 %v334, %v339
          %v345 = vmax.f32 %v335, %v341
          %346 = vst.msk [vmem:[#allocation2 + $0x1] sm:$0xff] %vm256, %v344
          %347 = vst.msk [vmem:[#allocation2 + $0x11] sm:$0xff] %vm256, %v345
        $region48: #{tpu_custom_call.1} parent=39 // pred_fallthru
          _
        %p348 = scmp.lt.s32.totalorder %s27, 1
        // Predicated region
        $region49: #{tpu_custom_call.1} parent=39 // pred_check
          %p349 = pneg %p348
        $region50: #{tpu_custom_call.1} parent=39 // pred_check_branch
          %351 = sbr.rel (%p349) target = $region52
        $region51: #{tpu_custom_call.1} parent=39 // pred_region
          %s352 = sadd.s32 %s255, 4
          %s353 = smul.u32 %s352, 16
          %s354 = scalar_lea.vmem %s228, %s353 [#allocation5]
          %v355 = vld [vmem:[%s354] sm:$0xff]
          %v356 = vld [vmem:[%s354 + $0x8] sm:$0xff]
          %v357 = vld [vmem:[%s354 + $0x10] sm:$0xff]
          %v358 = vld [vmem:[%s354 + $0x18] sm:$0xff]
          %v359 = vmax.f32 %v355, %v356
          %v360 = vmax.f32 %v357, %v358
          %363 = vrot.lane.b32.xlu0 %v359, 124
          %v364 = vpop.permute.xlu0 %363
          %365 = vrot.lane.b32.xlu0 %v360, 124
          %v366 = vpop.permute.xlu0 %365
          %v369 = vmax.f32 %v359, %v364
          %v370 = vmax.f32 %v360, %v366
          %371 = vst.msk [vmem:[%s262 + $0x1] sm:$0xff] %vm256, %v369
          %372 = vst.msk [vmem:[%s262 + $0x11] sm:$0xff] %vm256, %v370
        $region52: #{tpu_custom_call.1} parent=39 // pred_fallthru
          _
        %v373 = vld [vmem:[#allocation2] sm:$0xff]
        %v374 = vld [vmem:[#allocation2 + $0x8] sm:$0x3]
        %v375 = vld [vmem:[#allocation2 + $0x10] sm:$0xff]
        %v376 = vld [vmem:[#allocation2 + $0x18] sm:$0x3]
        %v377 = vld [vmem:[#allocation2 + $0x20] sm:$0xff]
        %v378 = vld [vmem:[#allocation2 + $0x28] sm:$0x3]
        %v379 = vld [vmem:[#allocation2 + $0x30] sm:$0xff]
        %v380 = vld [vmem:[#allocation2 + $0x38] sm:$0x3]
        %v381 = vld [vmem:[#allocation2 + $0x40] sm:$0xff]
        %v382 = vld [vmem:[#allocation2 + $0x48] sm:$0x3]
        %v383 = vld [vmem:[#allocation2 + $0x50] sm:$0xff]
        %v384 = vld [vmem:[#allocation2 + $0x58] sm:$0x3]
        %v385 = vld [vmem:[#allocation2 + $0x60] sm:$0xff]
        %v386 = vld [vmem:[#allocation2 + $0x68] sm:$0x3]
        %v387 = vld [vmem:[#allocation2 + $0x70] sm:$0xff]
        %v388 = vld [vmem:[#allocation2 + $0x78] sm:$0x3]
        %vm405 = vcmask 1046528
        %v406 = vrot.slane %v373, 1
        %v407 = vrot.slane %v374, 1
        %v408 = vsel %vm405, %v406, %v407
        %v409 = vrot.slane %v375, 1
        %v410 = vrot.slane %v376, 1
        %v411 = vsel %vm405, %v409, %v410
        %v412 = vrot.slane %v377, 1
        %v413 = vrot.slane %v378, 1
        %v414 = vsel %vm405, %v412, %v413
        %v415 = vrot.slane %v379, 1
        %v416 = vrot.slane %v380, 1
        %v417 = vsel %vm405, %v415, %v416
        %v418 = vrot.slane %v381, 1
        %v419 = vrot.slane %v382, 1
        %v420 = vsel %vm405, %v418, %v419
        %v421 = vrot.slane %v383, 1
        %v422 = vrot.slane %v384, 1
        %v423 = vsel %vm405, %v421, %v422
        %v424 = vrot.slane %v385, 1
        %v425 = vrot.slane %v386, 1
        %v426 = vsel %vm405, %v424, %v425
        %v427 = vrot.slane %v387, 1
        %v428 = vrot.slane %v388, 1
        %v429 = vsel %vm405, %v427, %v428
        %430 = vrot.lane.b32.xlu0 %v408, 4
        %v431 = vpop.permute.xlu0 %430
        %432 = vrot.lane.b32.xlu0 %v411, 4
        %v433 = vpop.permute.xlu0 %432
        %434 = vrot.lane.b32.xlu0 %v414, 4
        %v435 = vpop.permute.xlu0 %434
        %436 = vrot.lane.b32.xlu0 %v417, 4
        %v437 = vpop.permute.xlu0 %436
        %438 = vrot.lane.b32.xlu0 %v420, 4
        %v439 = vpop.permute.xlu0 %438
        %440 = vrot.lane.b32.xlu0 %v423, 4
        %v441 = vpop.permute.xlu0 %440
        %442 = vrot.lane.b32.xlu0 %v426, 4
        %v443 = vpop.permute.xlu0 %442
        %444 = vrot.lane.b32.xlu0 %v429, 4
        %v445 = vpop.permute.xlu0 %444
        %vm454 = vcmask 1045504
        %v455 = vrot.slane %v373, 2
        %v456 = vrot.slane %v374, 2
        %v457 = vsel %vm454, %v455, %v456
        %v458 = vrot.slane %v375, 2
        %v459 = vrot.slane %v376, 2
        %v460 = vsel %vm454, %v458, %v459
        %v461 = vrot.slane %v377, 2
        %v462 = vrot.slane %v378, 2
        %v463 = vsel %vm454, %v461, %v462
        %v464 = vrot.slane %v379, 2
        %v465 = vrot.slane %v380, 2
        %v466 = vsel %vm454, %v464, %v465
        %v467 = vrot.slane %v381, 2
        %v468 = vrot.slane %v382, 2
        %v469 = vsel %vm454, %v467, %v468
        %v470 = vrot.slane %v383, 2
        %v471 = vrot.slane %v384, 2
        %v472 = vsel %vm454, %v470, %v471
        %v473 = vrot.slane %v385, 2
        %v474 = vrot.slane %v386, 2
        %v475 = vsel %vm454, %v473, %v474
        %v476 = vrot.slane %v387, 2
        %v477 = vrot.slane %v388, 2
        %v478 = vsel %vm454, %v476, %v477
        %479 = vrot.lane.b32.xlu0 %v457, 8
        %v480 = vpop.permute.xlu0 %479
        %481 = vrot.lane.b32.xlu0 %v460, 8
        %v482 = vpop.permute.xlu0 %481
        %483 = vrot.lane.b32.xlu0 %v463, 8
        %v484 = vpop.permute.xlu0 %483
        %485 = vrot.lane.b32.xlu0 %v466, 8
        %v486 = vpop.permute.xlu0 %485
        %487 = vrot.lane.b32.xlu0 %v469, 8
        %v488 = vpop.permute.xlu0 %487
        %489 = vrot.lane.b32.xlu0 %v472, 8
        %v490 = vpop.permute.xlu0 %489
        %491 = vrot.lane.b32.xlu0 %v475, 8
        %v492 = vpop.permute.xlu0 %491
        %493 = vrot.lane.b32.xlu0 %v478, 8
        %v494 = vpop.permute.xlu0 %493
        %v503 = vsel %vm256, %v373, %v431
        %v504 = vsel %vm256, %v375, %v433
        %v505 = vsel %vm256, %v377, %v435
        %v506 = vsel %vm256, %v379, %v437
        %v507 = vsel %vm256, %v381, %v439
        %v508 = vsel %vm256, %v383, %v441
        %v509 = vsel %vm256, %v385, %v443
        %v510 = vsel %vm256, %v387, %v445
        %vm511 = vcmask 64512
        %v512 = vsel %vm511, %v503, %v480
        %v513 = vsel %vm511, %v504, %v482
        %v514 = vsel %vm511, %v505, %v484
        %v515 = vsel %vm511, %v506, %v486
        %v516 = vsel %vm511, %v507, %v488
        %v517 = vsel %vm511, %v508, %v490
        %v518 = vsel %vm511, %v509, %v492
        %v519 = vsel %vm511, %v510, %v494
        %v520 = vld [vmem:[%s1] sm:$0xff]
        %v521 = vld [vmem:[%s1 + $0x8] sm:$0xf]
        %s522 = scalar_lea.vmem %s1, 16
        %v523 = vld [vmem:[%s522] sm:$0xff]
        %v524 = vld [vmem:[%s522 + $0x8] sm:$0xf]
        %vm525 = vcmask 97280
        %v527 = vsel %vm525, %v513, 0
        %v530 = vsel %vm525, %v514, 0
        %v533 = vsel %vm525, %v515, 0
        %v536 = vsel %vm525, %v516, 0
        %v539 = vsel %vm525, %v517, 0
        %v542 = vsel %vm525, %v518, 0
        %vm544 = vcmask 1043456
        %v546 = vsel %vm544, %v524, 0
        %548 = vmatprep.subr.mxu0 0.0
        %549 = vmatpush1.msra.mxu0 %v523
        %550 = vmatprep.subr.mxu0 0.0
        %551 = vmatpush1.msra.mxu0 %v546
        %552 = vmatprep.subr.mxu0 0.0
        %553 = vmatpush1.msra.mxu0 0.0
        %554 = vmatprep.subr.mxu0 0.0
        %555 = vmatpush1.msra.mxu0 0.0
        %556 = vmatprep.subr.mxu0 0.0
        %557 = vmatpush1.msra.mxu0 0.0
        %558 = vmatprep.subr.mxu0 0.0
        %559 = vmatpush1.msra.mxu0 0.0
        %560 = vmatprep.subr.mxu0 0.0
        %561 = vmatpush1.msra.mxu0 0.0
        %562 = vmatprep.subr.mxu0 0.0
        %563 = vmatpush1.msra.mxu0 0.0
        %564 = vmatprep.subr.mxu0 0.0
        %565 = vmatpush1.msra.mxu0 0.0
        %566 = vmatprep.subr.mxu0 0.0
        %567 = vmatpush1.msra.mxu0 0.0
        %568 = vmatprep.subr.mxu0 0.0
        %569 = vmatpush1.msra.mxu0 0.0
        %570 = vmatprep.subr.mxu0 0.0
        %571 = vmatpush1.msra.mxu0 0.0
        %572 = vmatprep.subr.mxu0 0.0
        %573 = vmatpush1.msra.mxu0 0.0
        %574 = vmatprep.subr.mxu0 0.0
        %575 = vmatpush1.msra.mxu0 0.0
        %576 = vmatprep.subr.mxu0 0.0
        %577 = vmatpush1.msra.mxu0 0.0
        %578 = vmatprep.subr.mxu0 0.0
        %579 = vmatpush1.msra.mxu0 0.0
        %580 = vmatprep.subr.mxu0 0.0
        %581 = vmatpush1.msra.mxu0 0.0
        %582 = vmatprep.subr.mxu0 0.0
        %583 = vmatpush1.msra.mxu0 0.0
        %584 = vmatprep.subr.mxu0 0.0
        %585 = vmatpush1.msra.mxu0 0.0
        %586 = vmatprep.subr.mxu0 0.0
        %587 = vmatpush1.msra.mxu0 0.0
        %588 = vmatprep.subr.mxu0 0.0
        %589 = vmatpush1.msra.mxu0 0.0
        %590 = vmatprep.subr.mxu0 0.0
        %591 = vmatpush1.msra.mxu0 0.0
        %592 = vmatprep.subr.mxu0 0.0
        %593 = vmatpush1.msra.mxu0 0.0
        %594 = vmatprep.subr.mxu0 0.0
        %595 = vmatpush1.msra.mxu0 0.0
        %596 = vmatprep.subr.mxu0 0.0
        %597 = vmatpush1.msra.mxu0 0.0
        %598 = vmatprep.subr.mxu0 0.0
        %599 = vmatpush1.msra.mxu0 0.0
        %600 = vmatprep.subr.mxu0 0.0
        %601 = vmatpush1.msra.mxu0 0.0
        %602 = vmatprep.subr.mxu0 0.0
        %603 = vmatpush1.msra.mxu0 0.0
        %604 = vmatprep.subr.mxu0 0.0
        %605 = vmatpush1.msra.mxu0 0.0
        %606 = vmatprep.subr.mxu0 0.0
        %607 = vmatpush1.msra.mxu0 0.0
        %608 = vmatprep.subr.mxu0 0.0
        %609 = vmatpush1.msra.mxu0 0.0
        %610 = vmatprep.subr.mxu0 0.0
        %611 = vmatpush1.msra.mxu0 0.0
        %612 = vmatprep.mubr.f32.mxu0 0.0
        %613 = vmatmul.mubr.f32.gmra.mrb[0].mxu0 %v527
        %v614 = vpop.f32.mrb[0].mxu0
        %v615 = vadd.f32 0.0, %v614
        %v616 = vpop.f32.mrb[0].mxu0
        %617 = vmatprep.mubr.f32.mxu0 0.0
        %618 = vmatmul.mubr.f32.gmra.mrb[0].mxu0 %v530
        %v619 = vpop.f32.mrb[0].mxu0
        %v620 = vadd.f32 0.0, %v619
        %v621 = vpop.f32.mrb[0].mxu0
        %622 = vmatprep.mubr.f32.mxu0 0.0
        %623 = vmatmul.mubr.f32.gmra.mrb[0].mxu0 %v533
        %v624 = vpop.f32.mrb[0].mxu0
        %v625 = vadd.f32 0.0, %v624
        %v626 = vpop.f32.mrb[0].mxu0
        %627 = vmatprep.mubr.f32.mxu0 0.0
        %628 = vmatmul.mubr.f32.gmra.mrb[0].mxu0 %v536
        %v629 = vpop.f32.mrb[0].mxu0
        %v630 = vadd.f32 0.0, %v629
        %v631 = vpop.f32.mrb[0].mxu0
        %632 = vmatprep.mubr.f32.mxu0 0.0
        %633 = vmatmul.mubr.f32.gmra.mrb[0].mxu0 %v539
        %v634 = vpop.f32.mrb[0].mxu0
        %v635 = vadd.f32 0.0, %v634
        %v636 = vpop.f32.mrb[0].mxu0
        %637 = vmatprep.mubr.f32.mxu0 0.0
        %638 = vmatmul.mubr.f32.gmra.mrb[0].mxu0 %v542
        %v639 = vpop.f32.mrb[0].mxu0
        %v640 = vadd.f32 0.0, %v639
        %v641 = vpop.f32.mrb[0].mxu0
        %642 = vdwg.mxu0
        %v644 = vsel %vm525, %v512, 0
        %v647 = vsel %vm544, %v521, 0
        %649 = vmatprep.subr.mxu0 0.0
        %650 = vmatpush1.msra.mxu0 %v520
        %651 = vmatprep.subr.mxu0 0.0
        %652 = vmatpush1.msra.mxu0 %v647
        %653 = vmatprep.subr.mxu0 0.0
        %654 = vmatpush1.msra.mxu0 0.0
        %655 = vmatprep.subr.mxu0 0.0
        %656 = vmatpush1.msra.mxu0 0.0
        %657 = vmatprep.subr.mxu0 0.0
        %658 = vmatpush1.msra.mxu0 0.0
        %659 = vmatprep.subr.mxu0 0.0
        %660 = vmatpush1.msra.mxu0 0.0
        %661 = vmatprep.subr.mxu0 0.0
        %662 = vmatpush1.msra.mxu0 0.0
        %663 = vmatprep.subr.mxu0 0.0
        %664 = vmatpush1.msra.mxu0 0.0
        %665 = vmatprep.subr.mxu0 0.0
        %666 = vmatpush1.msra.mxu0 0.0
        %667 = vmatprep.subr.mxu0 0.0
        %668 = vmatpush1.msra.mxu0 0.0
        %669 = vmatprep.subr.mxu0 0.0
        %670 = vmatpush1.msra.mxu0 0.0
        %671 = vmatprep.subr.mxu0 0.0
        %672 = vmatpush1.msra.mxu0 0.0
        %673 = vmatprep.subr.mxu0 0.0
        %674 = vmatpush1.msra.mxu0 0.0
        %675 = vmatprep.subr.mxu0 0.0
        %676 = vmatpush1.msra.mxu0 0.0
        %677 = vmatprep.subr.mxu0 0.0
        %678 = vmatpush1.msra.mxu0 0.0
        %679 = vmatprep.subr.mxu0 0.0
        %680 = vmatpush1.msra.mxu0 0.0
        %681 = vmatprep.subr.mxu0 0.0
        %682 = vmatpush1.msra.mxu0 0.0
        %683 = vmatprep.subr.mxu0 0.0
        %684 = vmatpush1.msra.mxu0 0.0
        %685 = vmatprep.subr.mxu0 0.0
        %686 = vmatpush1.msra.mxu0 0.0
        %687 = vmatprep.subr.mxu0 0.0
        %688 = vmatpush1.msra.mxu0 0.0
        %689 = vmatprep.subr.mxu0 0.0
        %690 = vmatpush1.msra.mxu0 0.0
        %691 = vmatprep.subr.mxu0 0.0
        %692 = vmatpush1.msra.mxu0 0.0
        %693 = vmatprep.subr.mxu0 0.0
        %694 = vmatpush1.msra.mxu0 0.0
        %695 = vmatprep.subr.mxu0 0.0
        %696 = vmatpush1.msra.mxu0 0.0
        %697 = vmatprep.subr.mxu0 0.0
        %698 = vmatpush1.msra.mxu0 0.0
        %699 = vmatprep.subr.mxu0 0.0
        %700 = vmatpush1.msra.mxu0 0.0
        %701 = vmatprep.subr.mxu0 0.0
        %702 = vmatpush1.msra.mxu0 0.0
        %703 = vmatprep.subr.mxu0 0.0
        %704 = vmatpush1.msra.mxu0 0.0
        %705 = vmatprep.subr.mxu0 0.0
        %706 = vmatpush1.msra.mxu0 0.0
        %707 = vmatprep.subr.mxu0 0.0
        %708 = vmatpush1.msra.mxu0 0.0
        %709 = vmatprep.subr.mxu0 0.0
        %710 = vmatpush1.msra.mxu0 0.0
        %711 = vmatprep.subr.mxu0 0.0
        %712 = vmatpush1.msra.mxu0 0.0
        %713 = vmatprep.mubr.f32.mxu0 0.0
        %714 = vmatmul.mubr.f32.gmra.mrb[0].mxu0 %v644
        %v715 = vpop.f32.mrb[0].mxu0
        %v716 = vadd.f32 %v615, %v715
        %v717 = vpop.f32.mrb[0].mxu0
        %718 = vmatprep.mubr.f32.mxu0 0.0
        %719 = vmatmul.mubr.f32.gmra.mrb[0].mxu0 %v527
        %v720 = vpop.f32.mrb[0].mxu0
        %v721 = vadd.f32 %v620, %v720
        %v722 = vpop.f32.mrb[0].mxu0
        %723 = vmatprep.mubr.f32.mxu0 0.0
        %724 = vmatmul.mubr.f32.gmra.mrb[0].mxu0 %v530
        %v725 = vpop.f32.mrb[0].mxu0
        %v726 = vadd.f32 %v625, %v725
        %v727 = vpop.f32.mrb[0].mxu0
        %728 = vmatprep.mubr.f32.mxu0 0.0
        %729 = vmatmul.mubr.f32.gmra.mrb[0].mxu0 %v533
        %v730 = vpop.f32.mrb[0].mxu0
        %v731 = vadd.f32 %v630, %v730
        %v732 = vpop.f32.mrb[0].mxu0
        %733 = vmatprep.mubr.f32.mxu0 0.0
        %734 = vmatmul.mubr.f32.gmra.mrb[0].mxu0 %v536
        %v735 = vpop.f32.mrb[0].mxu0
        %v736 = vadd.f32 %v635, %v735
        %v737 = vpop.f32.mrb[0].mxu0
        %738 = vmatprep.mubr.f32.mxu0 0.0
        %739 = vmatmul.mubr.f32.gmra.mrb[0].mxu0 %v539
        %v740 = vpop.f32.mrb[0].mxu0
        %v741 = vadd.f32 %v640, %v740
        %v742 = vpop.f32.mrb[0].mxu0
        %743 = vdwg.mxu0
        %s744 = scalar_lea.vmem %s1, 32
        %v745 = vld [vmem:[%s744] sm:$0xff]
        %v746 = vld [vmem:[%s744 + $0x8] sm:$0xf]
        %v748 = vsel %vm525, %v519, 0
        %v751 = vsel %vm544, %v746, 0
        %753 = vmatprep.subr.mxu0 0.0
        %754 = vmatpush1.msra.mxu0 %v745
        %755 = vmatprep.subr.mxu0 0.0
        %756 = vmatpush1.msra.mxu0 %v751
        %757 = vmatprep.subr.mxu0 0.0
        %758 = vmatpush1.msra.mxu0 0.0
        %759 = vmatprep.subr.mxu0 0.0
        %760 = vmatpush1.msra.mxu0 0.0
        %761 = vmatprep.subr.mxu0 0.0
        %762 = vmatpush1.msra.mxu0 0.0
        %763 = vmatprep.subr.mxu0 0.0
        %764 = vmatpush1.msra.mxu0 0.0
        %765 = vmatprep.subr.mxu0 0.0
        %766 = vmatpush1.msra.mxu0 0.0
        %767 = vmatprep.subr.mxu0 0.0
        %768 = vmatpush1.msra.mxu0 0.0
        %769 = vmatprep.subr.mxu0 0.0
        %770 = vmatpush1.msra.mxu0 0.0
        %771 = vmatprep.subr.mxu0 0.0
        %772 = vmatpush1.msra.mxu0 0.0
        %773 = vmatprep.subr.mxu0 0.0
        %774 = vmatpush1.msra.mxu0 0.0
        %775 = vmatprep.subr.mxu0 0.0
        %776 = vmatpush1.msra.mxu0 0.0
        %777 = vmatprep.subr.mxu0 0.0
        %778 = vmatpush1.msra.mxu0 0.0
        %779 = vmatprep.subr.mxu0 0.0
        %780 = vmatpush1.msra.mxu0 0.0
        %781 = vmatprep.subr.mxu0 0.0
        %782 = vmatpush1.msra.mxu0 0.0
        %783 = vmatprep.subr.mxu0 0.0
        %784 = vmatpush1.msra.mxu0 0.0
        %785 = vmatprep.subr.mxu0 0.0
        %786 = vmatpush1.msra.mxu0 0.0
        %787 = vmatprep.subr.mxu0 0.0
        %788 = vmatpush1.msra.mxu0 0.0
        %789 = vmatprep.subr.mxu0 0.0
        %790 = vmatpush1.msra.mxu0 0.0
        %791 = vmatprep.subr.mxu0 0.0
        %792 = vmatpush1.msra.mxu0 0.0
        %793 = vmatprep.subr.mxu0 0.0
        %794 = vmatpush1.msra.mxu0 0.0
        %795 = vmatprep.subr.mxu0 0.0
        %796 = vmatpush1.msra.mxu0 0.0
        %797 = vmatprep.subr.mxu0 0.0
        %798 = vmatpush1.msra.mxu0 0.0
        %799 = vmatprep.subr.mxu0 0.0
        %800 = vmatpush1.msra.mxu0 0.0
        %801 = vmatprep.subr.mxu0 0.0
        %802 = vmatpush1.msra.mxu0 0.0
        %803 = vmatprep.subr.mxu0 0.0
        %804 = vmatpush1.msra.mxu0 0.0
        %805 = vmatprep.subr.mxu0 0.0
        %806 = vmatpush1.msra.mxu0 0.0
        %807 = vmatprep.subr.mxu0 0.0
        %808 = vmatpush1.msra.mxu0 0.0
        %809 = vmatprep.subr.mxu0 0.0
        %810 = vmatpush1.msra.mxu0 0.0
        %811 = vmatprep.subr.mxu0 0.0
        %812 = vmatpush1.msra.mxu0 0.0
        %813 = vmatprep.subr.mxu0 0.0
        %814 = vmatpush1.msra.mxu0 0.0
        %815 = vmatprep.subr.mxu0 0.0
        %816 = vmatpush1.msra.mxu0 0.0
        %817 = vmatprep.mubr.f32.mxu0 0.0
        %818 = vmatmul.mubr.f32.gmra.mrb[0].mxu0 %v530
        %v819 = vpop.f32.mrb[0].mxu0
        %v820 = vadd.f32 0.0, %v819
        %v821 = vpop.f32.mrb[0].mxu0
        %822 = vmatprep.mubr.f32.mxu0 0.0
        %823 = vmatmul.mubr.f32.gmra.mrb[0].mxu0 %v533
        %v824 = vpop.f32.mrb[0].mxu0
        %v825 = vadd.f32 0.0, %v824
        %v826 = vpop.f32.mrb[0].mxu0
        %827 = vmatprep.mubr.f32.mxu0 0.0
        %828 = vmatmul.mubr.f32.gmra.mrb[0].mxu0 %v536
        %v829 = vpop.f32.mrb[0].mxu0
        %v830 = vadd.f32 0.0, %v829
        %v831 = vpop.f32.mrb[0].mxu0
        %832 = vmatprep.mubr.f32.mxu0 0.0
        %833 = vmatmul.mubr.f32.gmra.mrb[0].mxu0 %v539
        %v834 = vpop.f32.mrb[0].mxu0
        %v835 = vadd.f32 0.0, %v834
        %v836 = vpop.f32.mrb[0].mxu0
        %837 = vmatprep.mubr.f32.mxu0 0.0
        %838 = vmatmul.mubr.f32.gmra.mrb[0].mxu0 %v542
        %v839 = vpop.f32.mrb[0].mxu0
        %v840 = vadd.f32 0.0, %v839
        %v841 = vpop.f32.mrb[0].mxu0
        %842 = vmatprep.mubr.f32.mxu0 0.0
        %843 = vmatmul.mubr.f32.gmra.mrb[0].mxu0 %v748
        %v844 = vpop.f32.mrb[0].mxu0
        %v845 = vadd.f32 0.0, %v844
        %v846 = vpop.f32.mrb[0].mxu0
        %847 = vdwg.mxu0
        %v848 = vadd.f32 %v716, %v820
        %v849 = vadd.f32 %v721, %v825
        %v850 = vadd.f32 %v726, %v830
        %v851 = vadd.f32 %v731, %v835
        %v852 = vadd.f32 %v736, %v840
        %v853 = vadd.f32 %v741, %v845
        %v854 = vld [vmem:[%s2] sm:$0x1]
        %v855 = vlaneseq
        %v856 = vshrl.u32 %v855, 7
        %v857 = vsub.s32 0, %v856
        %v858 = vrot.slane %v854, %v857
        %v859 = vmul.f32 %v848, %v858
        %v860 = vmul.f32 %v849, %v858
        %v861 = vmul.f32 %v850, %v858
        %v862 = vmul.f32 %v851, %v858
        %v863 = vmul.f32 %v852, %v858
        %v864 = vmul.f32 %v853, %v858
        %v865 = vld [vmem:[%s2 + $0x1] sm:$0x1]
        %v866 = vlaneseq
        %v867 = vshrl.u32 %v866, 7
        %v868 = vsub.s32 0, %v867
        %v869 = vrot.slane %v865, %v868
        %v870 = vadd.f32 %v859, %v869
        %v871 = vadd.f32 %v860, %v869
        %v872 = vadd.f32 %v861, %v869
        %v873 = vadd.f32 %v862, %v869
        %v874 = vadd.f32 %v863, %v869
        %v875 = vadd.f32 %v864, %v869
        %v876 = vmax.f32 %v870, 0.0
        %v877 = vmax.f32 %v871, 0.0
        %v878 = vmax.f32 %v872, 0.0
        %v879 = vmax.f32 %v873, 0.0
        %v880 = vmax.f32 %v874, 0.0
        %v881 = vmax.f32 %v875, 0.0
        %vm882 = vcmask 57344
        %883 = vst.msk [vmem:[#allocation3] sm:$0x1] %vm882, 0.0
        %884 = vst.msk [vmem:[#allocation3 + $0x10] sm:$0x1] %vm882, 0.0
        %885 = vst.msk [vmem:[#allocation3 + $0x20] sm:$0x1] %vm882, 0.0
        %886 = vst.msk [vmem:[#allocation3 + $0x30] sm:$0x1] %vm882, 0.0
        %887 = vst.msk [vmem:[#allocation3 + $0x40] sm:$0x1] %vm882, 0.0
        %888 = vst.msk [vmem:[#allocation3 + $0x50] sm:$0x1] %vm882, 0.0
        %889 = vst.msk [vmem:[#allocation3 + $0x9] sm:$0x1] %vm882, 0.0
        %890 = vst.msk [vmem:[#allocation3 + $0x19] sm:$0x1] %vm882, 0.0
        %891 = vst.msk [vmem:[#allocation3 + $0x29] sm:$0x1] %vm882, 0.0
        %892 = vst.msk [vmem:[#allocation3 + $0x39] sm:$0x1] %vm882, 0.0
        %893 = vst.msk [vmem:[#allocation3 + $0x49] sm:$0x1] %vm882, 0.0
        %894 = vst.msk [vmem:[#allocation3 + $0x59] sm:$0x1] %vm882, 0.0
        %895 = vst.msk [vmem:[#allocation3 + $0x1] sm:$0xff] %vm511, %v876
        %896 = vst.msk [vmem:[#allocation3 + $0x11] sm:$0xff] %vm511, %v877
        %897 = vst.msk [vmem:[#allocation3 + $0x21] sm:$0xff] %vm511, %v878
        %898 = vst.msk [vmem:[#allocation3 + $0x31] sm:$0xff] %vm511, %v879
        %899 = vst.msk [vmem:[#allocation3 + $0x41] sm:$0xff] %vm511, %v880
        %900 = vst.msk [vmem:[#allocation3 + $0x51] sm:$0xff] %vm511, %v881
        %p901 = scmp.eq.s32.totalorder %s27, 0
        // Predicated region
        $region53: #{tpu_custom_call.1} parent=39 // pred_check
          %p902 = pneg %p901
        $region54: #{tpu_custom_call.1} parent=39 // pred_check_branch
          %904 = sbr.rel (%p902) target = $region56
        $region55: #{tpu_custom_call.1} parent=39 // pred_region
          %905 = vst.msk [vmem:[#allocation3] sm:$0xff] %vm511, 0.0
          %vm906 = vcmask 58368
          %907 = vst.msk [vmem:[#allocation3 + $0x8] sm:$0x3] %vm906, 0.0
        $region56: #{tpu_custom_call.1} parent=39 // pred_fallthru
          _
        %p908 = scmp.eq.s32.totalorder %s27, 1
        // Predicated region
        $region57: #{tpu_custom_call.1} parent=39 // pred_check
          %p909 = pneg %p908
        $region58: #{tpu_custom_call.1} parent=39 // pred_check_branch
          %911 = sbr.rel (%p909) target = $region60
        $region59: #{tpu_custom_call.1} parent=39 // pred_region
          %s912 = scalar_lea.vmem [#allocation3], 80
          %913 = vst.msk [vmem:[%s912] sm:$0xff] %vm511, 0.0
          %vm914 = vcmask 58368
          %915 = vst.msk [vmem:[%s912 + $0x8] sm:$0x3] %vm914, 0.0
        $region60: #{tpu_custom_call.1} parent=39 // pred_fallthru
          _
        %v916 = vld [vmem:[#allocation3] sm:$0xff]
        %v917 = vld [vmem:[#allocation3 + $0x8] sm:$0x3]
        %v918 = vld [vmem:[#allocation3 + $0x10] sm:$0xff]
        %v919 = vld [vmem:[#allocation3 + $0x18] sm:$0x3]
        %v920 = vld [vmem:[#allocation3 + $0x20] sm:$0xff]
        %v921 = vld [vmem:[#allocation3 + $0x28] sm:$0x3]
        %v922 = vld [vmem:[#allocation3 + $0x30] sm:$0xff]
        %v923 = vld [vmem:[#allocation3 + $0x38] sm:$0x3]
        %v924 = vld [vmem:[#allocation3 + $0x40] sm:$0xff]
        %v925 = vld [vmem:[#allocation3 + $0x48] sm:$0x3]
        %v926 = vld [vmem:[#allocation3 + $0x50] sm:$0xff]
        %v927 = vld [vmem:[#allocation3 + $0x58] sm:$0x3]
        %v940 = vrot.slane %v916, 1
        %v941 = vrot.slane %v917, 1
        %v942 = vsel %vm405, %v940, %v941
        %v943 = vrot.slane %v918, 1
        %v944 = vrot.slane %v919, 1
        %v945 = vsel %vm405, %v943, %v944
        %v946 = vrot.slane %v920, 1
        %v947 = vrot.slane %v921, 1
        %v948 = vsel %vm405, %v946, %v947
        %v949 = vrot.slane %v922, 1
        %v950 = vrot.slane %v923, 1
        %v951 = vsel %vm405, %v949, %v950
        %v952 = vrot.slane %v924, 1
        %v953 = vrot.slane %v925, 1
        %v954 = vsel %vm405, %v952, %v953
        %v955 = vrot.slane %v926, 1
        %v956 = vrot.slane %v927, 1
        %v957 = vsel %vm405, %v955, %v956
        %958 = vrot.lane.b32.xlu0 %v942, 8
        %v959 = vpop.permute.xlu0 %958
        %960 = vrot.lane.b32.xlu0 %v945, 8
        %v961 = vpop.permute.xlu0 %960
        %962 = vrot.lane.b32.xlu0 %v948, 8
        %v963 = vpop.permute.xlu0 %962
        %964 = vrot.lane.b32.xlu0 %v951, 8
        %v965 = vpop.permute.xlu0 %964
        %966 = vrot.lane.b32.xlu0 %v954, 8
        %v967 = vpop.permute.xlu0 %966
        %968 = vrot.lane.b32.xlu0 %v957, 8
        %v969 = vpop.permute.xlu0 %968
        %v976 = vrot.slane %v916, 2
        %v977 = vrot.slane %v917, 2
        %v978 = vsel %vm454, %v976, %v977
        %v979 = vrot.slane %v918, 2
        %v980 = vrot.slane %v919, 2
        %v981 = vsel %vm454, %v979, %v980
        %v982 = vrot.slane %v920, 2
        %v983 = vrot.slane %v921, 2
        %v984 = vsel %vm454, %v982, %v983
        %v985 = vrot.slane %v922, 2
        %v986 = vrot.slane %v923, 2
        %v987 = vsel %vm454, %v985, %v986
        %v988 = vrot.slane %v924, 2
        %v989 = vrot.slane %v925, 2
        %v990 = vsel %vm454, %v988, %v989
        %v991 = vrot.slane %v926, 2
        %v992 = vrot.slane %v927, 2
        %v993 = vsel %vm454, %v991, %v992
        %994 = vrot.lane.b32.xlu0 %v978, 16
        %v995 = vpop.permute.xlu0 %994
        %996 = vrot.lane.b32.xlu0 %v981, 16
        %v997 = vpop.permute.xlu0 %996
        %998 = vrot.lane.b32.xlu0 %v984, 16
        %v999 = vpop.permute.xlu0 %998
        %1000 = vrot.lane.b32.xlu0 %v987, 16
        %v1001 = vpop.permute.xlu0 %1000
        %1002 = vrot.lane.b32.xlu0 %v990, 16
        %v1003 = vpop.permute.xlu0 %1002
        %1004 = vrot.lane.b32.xlu0 %v993, 16
        %v1005 = vpop.permute.xlu0 %1004
        %v1012 = vsel %vm511, %v916, %v959
        %v1013 = vsel %vm511, %v918, %v961
        %v1014 = vsel %vm511, %v920, %v963
        %v1015 = vsel %vm511, %v922, %v965
        %v1016 = vsel %vm511, %v924, %v967
        %v1017 = vsel %vm511, %v926, %v969
        %vm1018 = vcmask 130048
        %v1019 = vsel %vm1018, %v1012, %v995
        %v1020 = vsel %vm1018, %v1013, %v997
        %v1021 = vsel %vm1018, %v1014, %v999
        %v1022 = vsel %vm1018, %v1015, %v1001
        %v1023 = vsel %vm1018, %v1016, %v1003
        %v1024 = vsel %vm1018, %v1017, %v1005
        %v1025 = vld [vmem:[%s3] sm:$0xff]
        %v1026 = vld [vmem:[%s3 + $0x8] sm:$0xff]
        %v1027 = vld [vmem:[%s3 + $0x10] sm:$0xff]
        %s1028 = scalar_lea.vmem %s3, 24
        %v1029 = vld [vmem:[%s1028] sm:$0xff]
        %v1030 = vld [vmem:[%s1028 + $0x8] sm:$0xff]
        %v1031 = vld [vmem:[%s1028 + $0x10] sm:$0xff]
        %vm1032 = vcmask 195584
        %v1034 = vsel %vm1032, %v1020, 0
        %v1037 = vsel %vm1032, %v1021, 0
        %v1040 = vsel %vm1032, %v1022, 0
        %v1043 = vsel %vm1032, %v1023, 0
        %1045 = vmatprep.subr.mxu0 0.0
        %1046 = vmatpush1.msra.mxu0 %v1029
        %1047 = vmatprep.subr.mxu0 0.0
        %1048 = vmatpush1.msra.mxu0 %v1030
        %1049 = vmatprep.subr.mxu0 0.0
        %1050 = vmatpush1.msra.mxu0 %v1031
        %1051 = vmatprep.subr.mxu0 0.0
        %1052 = vmatpush1.msra.mxu0 0.0
        %1053 = vmatprep.subr.mxu0 0.0
        %1054 = vmatpush1.msra.mxu0 0.0
        %1055 = vmatprep.subr.mxu0 0.0
        %1056 = vmatpush1.msra.mxu0 0.0
        %1057 = vmatprep.subr.mxu0 0.0
        %1058 = vmatpush1.msra.mxu0 0.0
        %1059 = vmatprep.subr.mxu0 0.0
        %1060 = vmatpush1.msra.mxu0 0.0
        %1061 = vmatprep.subr.mxu0 0.0
        %1062 = vmatpush1.msra.mxu0 0.0
        %1063 = vmatprep.subr.mxu0 0.0
        %1064 = vmatpush1.msra.mxu0 0.0
        %1065 = vmatprep.subr.mxu0 0.0
        %1066 = vmatpush1.msra.mxu0 0.0
        %1067 = vmatprep.subr.mxu0 0.0
        %1068 = vmatpush1.msra.mxu0 0.0
        %1069 = vmatprep.subr.mxu0 0.0
        %1070 = vmatpush1.msra.mxu0 0.0
        %1071 = vmatprep.subr.mxu0 0.0
        %1072 = vmatpush1.msra.mxu0 0.0
        %1073 = vmatprep.subr.mxu0 0.0
        %1074 = vmatpush1.msra.mxu0 0.0
        %1075 = vmatprep.subr.mxu0 0.0
        %1076 = vmatpush1.msra.mxu0 0.0
        %1077 = vmatprep.subr.mxu0 0.0
        %1078 = vmatpush1.msra.mxu0 0.0
        %1079 = vmatprep.subr.mxu0 0.0
        %1080 = vmatpush1.msra.mxu0 0.0
        %1081 = vmatprep.subr.mxu0 0.0
        %1082 = vmatpush1.msra.mxu0 0.0
        %1083 = vmatprep.subr.mxu0 0.0
        %1084 = vmatpush1.msra.mxu0 0.0
        %1085 = vmatprep.subr.mxu0 0.0
        %1086 = vmatpush1.msra.mxu0 0.0
        %1087 = vmatprep.subr.mxu0 0.0
        %1088 = vmatpush1.msra.mxu0 0.0
        %1089 = vmatprep.subr.mxu0 0.0
        %1090 = vmatpush1.msra.mxu0 0.0
        %1091 = vmatprep.subr.mxu0 0.0
        %1092 = vmatpush1.msra.mxu0 0.0
        %1093 = vmatprep.subr.mxu0 0.0
        %1094 = vmatpush1.msra.mxu0 0.0
        %1095 = vmatprep.subr.mxu0 0.0
        %1096 = vmatpush1.msra.mxu0 0.0
        %1097 = vmatprep.subr.mxu0 0.0
        %1098 = vmatpush1.msra.mxu0 0.0
        %1099 = vmatprep.subr.mxu0 0.0
        %1100 = vmatpush1.msra.mxu0 0.0
        %1101 = vmatprep.subr.mxu0 0.0
        %1102 = vmatpush1.msra.mxu0 0.0
        %1103 = vmatprep.subr.mxu0 0.0
        %1104 = vmatpush1.msra.mxu0 0.0
        %1105 = vmatprep.subr.mxu0 0.0
        %1106 = vmatpush1.msra.mxu0 0.0
        %1107 = vmatprep.subr.mxu0 0.0
        %1108 = vmatpush1.msra.mxu0 0.0
        %1109 = vmatprep.mubr.f32.mxu0 0.0
        %1110 = vmatmul.mubr.f32.gmra.mrb[0].mxu0 %v1034
        %v1111 = vpop.f32.mrb[0].mxu0
        %v1112 = vadd.f32 0.0, %v1111
        %v1113 = vpop.f32.mrb[0].mxu0
        %1114 = vmatprep.mubr.f32.mxu0 0.0
        %1115 = vmatmul.mubr.f32.gmra.mrb[0].mxu0 %v1037
        %v1116 = vpop.f32.mrb[0].mxu0
        %v1117 = vadd.f32 0.0, %v1116
        %v1118 = vpop.f32.mrb[0].mxu0
        %1119 = vmatprep.mubr.f32.mxu0 0.0
        %1120 = vmatmul.mubr.f32.gmra.mrb[0].mxu0 %v1040
        %v1121 = vpop.f32.mrb[0].mxu0
        %v1122 = vadd.f32 0.0, %v1121
        %v1123 = vpop.f32.mrb[0].mxu0
        %1124 = vmatprep.mubr.f32.mxu0 0.0
        %1125 = vmatmul.mubr.f32.gmra.mrb[0].mxu0 %v1043
        %v1126 = vpop.f32.mrb[0].mxu0
        %v1127 = vadd.f32 0.0, %v1126
        %v1128 = vpop.f32.mrb[0].mxu0
        %1129 = vdwg.mxu0
        %v1131 = vsel %vm1032, %v1019, 0
        %1133 = vmatprep.subr.mxu0 0.0
        %1134 = vmatpush1.msra.mxu0 %v1025
        %1135 = vmatprep.subr.mxu0 0.0
        %1136 = vmatpush1.msra.mxu0 %v1026
        %1137 = vmatprep.subr.mxu0 0.0
        %1138 = vmatpush1.msra.mxu0 %v1027
        %1139 = vmatprep.subr.mxu0 0.0
        %1140 = vmatpush1.msra.mxu0 0.0
        %1141 = vmatprep.subr.mxu0 0.0
        %1142 = vmatpush1.msra.mxu0 0.0
        %1143 = vmatprep.subr.mxu0 0.0
        %1144 = vmatpush1.msra.mxu0 0.0
        %1145 = vmatprep.subr.mxu0 0.0
        %1146 = vmatpush1.msra.mxu0 0.0
        %1147 = vmatprep.subr.mxu0 0.0
        %1148 = vmatpush1.msra.mxu0 0.0
        %1149 = vmatprep.subr.mxu0 0.0
        %1150 = vmatpush1.msra.mxu0 0.0
        %1151 = vmatprep.subr.mxu0 0.0
        %1152 = vmatpush1.msra.mxu0 0.0
        %1153 = vmatprep.subr.mxu0 0.0
        %1154 = vmatpush1.msra.mxu0 0.0
        %1155 = vmatprep.subr.mxu0 0.0
        %1156 = vmatpush1.msra.mxu0 0.0
        %1157 = vmatprep.subr.mxu0 0.0
        %1158 = vmatpush1.msra.mxu0 0.0
        %1159 = vmatprep.subr.mxu0 0.0
        %1160 = vmatpush1.msra.mxu0 0.0
        %1161 = vmatprep.subr.mxu0 0.0
        %1162 = vmatpush1.msra.mxu0 0.0
        %1163 = vmatprep.subr.mxu0 0.0
        %1164 = vmatpush1.msra.mxu0 0.0
        %1165 = vmatprep.subr.mxu0 0.0
        %1166 = vmatpush1.msra.mxu0 0.0
        %1167 = vmatprep.subr.mxu0 0.0
        %1168 = vmatpush1.msra.mxu0 0.0
        %1169 = vmatprep.subr.mxu0 0.0
        %1170 = vmatpush1.msra.mxu0 0.0
        %1171 = vmatprep.subr.mxu0 0.0
        %1172 = vmatpush1.msra.mxu0 0.0
        %1173 = vmatprep.subr.mxu0 0.0
        %1174 = vmatpush1.msra.mxu0 0.0
        %1175 = vmatprep.subr.mxu0 0.0
        %1176 = vmatpush1.msra.mxu0 0.0
        %1177 = vmatprep.subr.mxu0 0.0
        %1178 = vmatpush1.msra.mxu0 0.0
        %1179 = vmatprep.subr.mxu0 0.0
        %1180 = vmatpush1.msra.mxu0 0.0
        %1181 = vmatprep.subr.mxu0 0.0
        %1182 = vmatpush1.msra.mxu0 0.0
        %1183 = vmatprep.subr.mxu0 0.0
        %1184 = vmatpush1.msra.mxu0 0.0
        %1185 = vmatprep.subr.mxu0 0.0
        %1186 = vmatpush1.msra.mxu0 0.0
        %1187 = vmatprep.subr.mxu0 0.0
        %1188 = vmatpush1.msra.mxu0 0.0
        %1189 = vmatprep.subr.mxu0 0.0
        %1190 = vmatpush1.msra.mxu0 0.0
        %1191 = vmatprep.subr.mxu0 0.0
        %1192 = vmatpush1.msra.mxu0 0.0
        %1193 = vmatprep.subr.mxu0 0.0
        %1194 = vmatpush1.msra.mxu0 0.0
        %1195 = vmatprep.subr.mxu0 0.0
        %1196 = vmatpush1.msra.mxu0 0.0
        %1197 = vmatprep.mubr.f32.mxu0 0.0
        %1198 = vmatmul.mubr.f32.gmra.mrb[0].mxu0 %v1131
        %v1199 = vpop.f32.mrb[0].mxu0
        %v1200 = vadd.f32 %v1112, %v1199
        %v1201 = vpop.f32.mrb[0].mxu0
        %1202 = vmatprep.mubr.f32.mxu0 0.0
        %1203 = vmatmul.mubr.f32.gmra.mrb[0].mxu0 %v1034
        %v1204 = vpop.f32.mrb[0].mxu0
        %v1205 = vadd.f32 %v1117, %v1204
        %v1206 = vpop.f32.mrb[0].mxu0
        %1207 = vmatprep.mubr.f32.mxu0 0.0
        %1208 = vmatmul.mubr.f32.gmra.mrb[0].mxu0 %v1037
        %v1209 = vpop.f32.mrb[0].mxu0
        %v1210 = vadd.f32 %v1122, %v1209
        %v1211 = vpop.f32.mrb[0].mxu0
        %1212 = vmatprep.mubr.f32.mxu0 0.0
        %1213 = vmatmul.mubr.f32.gmra.mrb[0].mxu0 %v1040
        %v1214 = vpop.f32.mrb[0].mxu0
        %v1215 = vadd.f32 %v1127, %v1214
        %v1216 = vpop.f32.mrb[0].mxu0
        %1217 = vdwg.mxu0
        %s1218 = scalar_lea.vmem %s3, 48
        %v1219 = vld [vmem:[%s1218] sm:$0xff]
        %v1220 = vld [vmem:[%s1218 + $0x8] sm:$0xff]
        %v1221 = vld [vmem:[%s1218 + $0x10] sm:$0xff]
        %v1223 = vsel %vm1032, %v1024, 0
        %1225 = vmatprep.subr.mxu0 0.0
        %1226 = vmatpush1.msra.mxu0 %v1219
        %1227 = vmatprep.subr.mxu0 0.0
        %1228 = vmatpush1.msra.mxu0 %v1220
        %1229 = vmatprep.subr.mxu0 0.0
        %1230 = vmatpush1.msra.mxu0 %v1221
        %1231 = vmatprep.subr.mxu0 0.0
        %1232 = vmatpush1.msra.mxu0 0.0
        %1233 = vmatprep.subr.mxu0 0.0
        %1234 = vmatpush1.msra.mxu0 0.0
        %1235 = vmatprep.subr.mxu0 0.0
        %1236 = vmatpush1.msra.mxu0 0.0
        %1237 = vmatprep.subr.mxu0 0.0
        %1238 = vmatpush1.msra.mxu0 0.0
        %1239 = vmatprep.subr.mxu0 0.0
        %1240 = vmatpush1.msra.mxu0 0.0
        %1241 = vmatprep.subr.mxu0 0.0
        %1242 = vmatpush1.msra.mxu0 0.0
        %1243 = vmatprep.subr.mxu0 0.0
        %1244 = vmatpush1.msra.mxu0 0.0
        %1245 = vmatprep.subr.mxu0 0.0
        %1246 = vmatpush1.msra.mxu0 0.0
        %1247 = vmatprep.subr.mxu0 0.0
        %1248 = vmatpush1.msra.mxu0 0.0
        %1249 = vmatprep.subr.mxu0 0.0
        %1250 = vmatpush1.msra.mxu0 0.0
        %1251 = vmatprep.subr.mxu0 0.0
        %1252 = vmatpush1.msra.mxu0 0.0
        %1253 = vmatprep.subr.mxu0 0.0
        %1254 = vmatpush1.msra.mxu0 0.0
        %1255 = vmatprep.subr.mxu0 0.0
        %1256 = vmatpush1.msra.mxu0 0.0
        %1257 = vmatprep.subr.mxu0 0.0
        %1258 = vmatpush1.msra.mxu0 0.0
        %1259 = vmatprep.subr.mxu0 0.0
        %1260 = vmatpush1.msra.mxu0 0.0
        %1261 = vmatprep.subr.mxu0 0.0
        %1262 = vmatpush1.msra.mxu0 0.0
        %1263 = vmatprep.subr.mxu0 0.0
        %1264 = vmatpush1.msra.mxu0 0.0
        %1265 = vmatprep.subr.mxu0 0.0
        %1266 = vmatpush1.msra.mxu0 0.0
        %1267 = vmatprep.subr.mxu0 0.0
        %1268 = vmatpush1.msra.mxu0 0.0
        %1269 = vmatprep.subr.mxu0 0.0
        %1270 = vmatpush1.msra.mxu0 0.0
        %1271 = vmatprep.subr.mxu0 0.0
        %1272 = vmatpush1.msra.mxu0 0.0
        %1273 = vmatprep.subr.mxu0 0.0
        %1274 = vmatpush1.msra.mxu0 0.0
        %1275 = vmatprep.subr.mxu0 0.0
        %1276 = vmatpush1.msra.mxu0 0.0
        %1277 = vmatprep.subr.mxu0 0.0
        %1278 = vmatpush1.msra.mxu0 0.0
        %1279 = vmatprep.subr.mxu0 0.0
        %1280 = vmatpush1.msra.mxu0 0.0
        %1281 = vmatprep.subr.mxu0 0.0
        %1282 = vmatpush1.msra.mxu0 0.0
        %1283 = vmatprep.subr.mxu0 0.0
        %1284 = vmatpush1.msra.mxu0 0.0
        %1285 = vmatprep.subr.mxu0 0.0
        %1286 = vmatpush1.msra.mxu0 0.0
        %1287 = vmatprep.subr.mxu0 0.0
        %1288 = vmatpush1.msra.mxu0 0.0
        %1289 = vmatprep.mubr.f32.mxu0 0.0
        %1290 = vmatmul.mubr.f32.gmra.mrb[0].mxu0 %v1037
        %v1291 = vpop.f32.mrb[0].mxu0
        %v1292 = vadd.f32 0.0, %v1291
        %v1293 = vpop.f32.mrb[0].mxu0
        %1294 = vmatprep.mubr.f32.mxu0 0.0
        %1295 = vmatmul.mubr.f32.gmra.mrb[0].mxu0 %v1040
        %v1296 = vpop.f32.mrb[0].mxu0
        %v1297 = vadd.f32 0.0, %v1296
        %v1298 = vpop.f32.mrb[0].mxu0
        %1299 = vmatprep.mubr.f32.mxu0 0.0
        %1300 = vmatmul.mubr.f32.gmra.mrb[0].mxu0 %v1043
        %v1301 = vpop.f32.mrb[0].mxu0
        %v1302 = vadd.f32 0.0, %v1301
        %v1303 = vpop.f32.mrb[0].mxu0
        %1304 = vmatprep.mubr.f32.mxu0 0.0
        %1305 = vmatmul.mubr.f32.gmra.mrb[0].mxu0 %v1223
        %v1306 = vpop.f32.mrb[0].mxu0
        %v1307 = vadd.f32 0.0, %v1306
        %v1308 = vpop.f32.mrb[0].mxu0
        %1309 = vdwg.mxu0
        %v1310 = vadd.f32 %v1200, %v1292
        %v1311 = vadd.f32 %v1205, %v1297
        %v1312 = vadd.f32 %v1210, %v1302
        %v1313 = vadd.f32 %v1215, %v1307
        %v1314 = vld [vmem:[%s4] sm:$0x1]
        %v1315 = vlaneseq
        %v1316 = vshrl.u32 %v1315, 7
        %v1317 = vsub.s32 0, %v1316
        %v1318 = vrot.slane %v1314, %v1317
        %v1319 = vmul.f32 %v1310, %v1318
        %v1320 = vmul.f32 %v1311, %v1318
        %v1321 = vmul.f32 %v1312, %v1318
        %v1322 = vmul.f32 %v1313, %v1318
        %v1323 = vld [vmem:[%s4 + $0x1] sm:$0x1]
        %v1324 = vlaneseq
        %v1325 = vshrl.u32 %v1324, 7
        %v1326 = vsub.s32 0, %v1325
        %v1327 = vrot.slane %v1323, %v1326
        %v1328 = vadd.f32 %v1319, %v1327
        %v1329 = vadd.f32 %v1320, %v1327
        %v1330 = vadd.f32 %v1321, %v1327
        %v1331 = vadd.f32 %v1322, %v1327
        %v1332 = vmax.f32 %v1328, 0.0
        %v1333 = vmax.f32 %v1329, 0.0
        %v1334 = vmax.f32 %v1330, 0.0
        %v1335 = vmax.f32 %v1331, 0.0
        %s1336 = smul.u32 %s255, 8
        %s1337 = scalar_lea.vmem [#allocation4], %s1336
        %1338 = vst.msk [vmem:[%s1337] sm:$0xff] %vm511, %v1332
        %1339 = vst.msk [vmem:[%s1337 + $0x8] sm:$0xff] %vm511, %v1333
        %1340 = vst.msk [vmem:[%s1337 + $0x10] sm:$0xff] %vm511, %v1334
        %1341 = vst.msk [vmem:[%s1337 + $0x18] sm:$0xff] %vm511, %v1335
        // Predicated region
        $region61: #{tpu_custom_call.1} parent=39 // pred_check
          %p1342 = pneg %p908
        $region62: #{tpu_custom_call.1} parent=39 // pred_check_branch
          %1344 = sbr.rel (%p1342) target = $region64
        $region63: #{tpu_custom_call.1} parent=39 // pred_region
          %v1345 = vld [vmem:[#allocation4] sm:$0xff]
          %v1346 = vld [vmem:[#allocation4 + $0x8] sm:$0xff]
          %v1347 = vld [vmem:[#allocation4 + $0x10] sm:$0xff]
          %v1348 = vld [vmem:[#allocation4 + $0x18] sm:$0xff]
          %v1349 = vld [vmem:[#allocation4 + $0x20] sm:$0xff]
          %v1350 = vld [vmem:[#allocation4 + $0x28] sm:$0xff]
          %v1351 = vld [vmem:[#allocation4 + $0x30] sm:$0xff]
          %v1352 = vld [vmem:[#allocation4 + $0x38] sm:$0xff]
          %1353 = vxpose.xlu0.b32.start [1/16] %v1345, 128
          %1354 = vxpose.xlu0.b32.cont [2/16] %v1346, 128
          %1355 = vxpose.xlu0.b32.cont [3/16] %v1347, 128
          %1356 = vxpose.xlu0.b32.cont [4/16] %v1348, 128
          %1357 = vxpose.xlu0.b32.cont [5/16] %v1349, 128
          %1358 = vxpose.xlu0.b32.cont [6/16] %v1350, 128
          %1359 = vxpose.xlu0.b32.cont [7/16] %v1351, 128
          %1360 = vxpose.xlu0.b32.cont [8/16] %v1352, 128
          %1361 = vxpose.xlu0.b32.cont [9/16] 0.0, 128
          %1362 = vxpose.xlu0.b32.cont [10/16] 0.0, 128
          %1363 = vxpose.xlu0.b32.cont [11/16] 0.0, 128
          %1364 = vxpose.xlu0.b32.cont [12/16] 0.0, 128
          %1365 = vxpose.xlu0.b32.cont [13/16] 0.0, 128
          %1366 = vxpose.xlu0.b32.cont [14/16] 0.0, 128
          %1367 = vxpose.xlu0.b32.cont [15/16] 0.0, 128
          %1368 = vxpose.xlu0.b32.end [16/16] 0.0, 128
          %v1369 = vpop.trf.xlu0
          %v1370 = vpop.trf.xlu0
          %v1371 = vpop.trf.xlu0
          %v1372 = vpop.trf.xlu0
          %v1373 = vpop.trf.xlu0
          %v1374 = vpop.trf.xlu0
          %v1375 = vpop.trf.xlu0
          %v1376 = vpop.trf.xlu0
          %v1377 = vpop.trf.xlu0
          %v1378 = vpop.trf.xlu0
          %v1379 = vpop.trf.xlu0
          %v1380 = vpop.trf.xlu0
          %v1381 = vpop.trf.xlu0
          %v1382 = vpop.trf.xlu0
          %v1383 = vpop.trf.xlu0
          %v1384 = vpop.trf.xlu0
          %vm1385 = vcmask 523264
          %1386 = vst.msk [vmem:[%s254] sm:$0xff] %vm1385, %v1369
        $region64: #{tpu_custom_call.1} parent=39 // pred_fallthru
          _
        %s1387 = sand.u32 %s152, 1
        %s1388 = scalar_lea.sflag [#allocation7], %s1387
        %s1389 = sand.u32 %s152, 1
        %s1390 = smul.addr %s1389, 8
        %s1391 = scalar_lea.vmem [#allocation8], %s1390
        // Predicated region
        $region65: #{tpu_custom_call.1} parent=39 // pred_check
          %p1392 = pneg %p162
        $region66: #{tpu_custom_call.1} parent=39 // pred_check_branch
          %1394 = sbr.rel (%p1392) target = $region68
        $region67: #{tpu_custom_call.1} parent=39 // pred_region
          %s1396 = ssub.s32 128, 128
          %1397 = vsyncadd %s1388, %s1396
          %s1398 = smul.addr %s26, 128
          %s1399 = scalar_lea.hbm %s5, %s1398
          %s1401 = sshll.u32 %s1391, 4
          %s1402 = int_to_ptr.vmem [resolvable:$true] %s1401
          %1404 = dma.vmem_to_hbm [thread:$0]  %s1402, 128, %s1399, %s1388
        $region68: #{tpu_custom_call.1} parent=39 // pred_fallthru
          _
      $region40: #{tpu_custom_call.1} parent=5 // pred_fallthru
        _
      %p1405 = scmp.le.s32.totalorder 2, %s17
      // Predicated region
      $region69: #{tpu_custom_call.1} parent=5 // pred_check
        %p1406 = pneg %p1405
      $region70: #{tpu_custom_call.1} parent=5 // pred_check_branch
        %1408 = sbr.rel (%p1406) target = $region72
      $region71: #{tpu_custom_call.1} parent=5 // pred_region
        %s1409 = ssub.s32 %s17, 2
        // Predicated region
        $region73: #{tpu_custom_call.1} parent=71 // pred_check
          %p1410 = pneg %p168
        $region74: #{tpu_custom_call.1} parent=71 // pred_check_branch
          %1412 = sbr.rel (%p1410) target = $region76
        $region75: #{tpu_custom_call.1} parent=71 // pred_region
          %s1413 = sand.u32 %s153, 1
          %s1414 = scalar_lea.sflag [#allocation7], %s1413
          %s1415 = sand.u32 %s153, 1
          %s1416 = smul.addr %s1415, 8
          %s1417 = scalar_lea.vmem [#allocation8], %s1416
          %1418 = dma.done %s1414, 128
        $region76: #{tpu_custom_call.1} parent=71 // pred_fallthru
          _
      $region72: #{tpu_custom_call.1} parent=5 // pred_fallthru
        _
    $region6: #{tpu_custom_call.1} parent=1 // loop_footer
      %s21 = sadd.s32 1, %s17
    $region7: #{tpu_custom_call.1} parent=1 // loop_footer_branch
      %16 = sbr.rel target = $region3
    $region8: #{tpu_custom_call.1} parent=1 // loop_exit
      _
    %1419 = vsyncpa [#allocation6], 1
    %s1420 = scalar_lea.sflag [#allocation6], 1
    %1421 = vsyncpa %s1420, 1
    %1422 = vsyncpa [#allocation7], 1
    %s1423 = scalar_lea.sflag [#allocation7], 1
    %1424 = vsyncpa %s1423, 1

</llo_original>
